<compile_context>
chip_gen: v6e
topology: v6e:2x2x1
jax: 0.10.0
libtpu: 0.0.40
codegen_flags: <defaults>
</compile_context>

<pallas_src>
import functools

import jax
import jax.numpy as jnp
from jax.experimental import pallas as pl
from jax.experimental.pallas import tpu as pltpu


def _supports_bf16_eup():
    """bf16 transcendentals exist on v6e / v7x; not on v5e and older."""
    try:
        kind = jax.devices()[0].device_kind.lower()
    except Exception:
        return False
    return any(tag in kind for tag in ("v6", "v7", "7x"))


def _qkv_proj_kernel(x_ref, w_ref, o_ref):
    # x_ref: (1, tn, C); w_ref: (C, 3C) bf16 (scale pre-folded into Q cols);
    # o_ref: (1, tn, 3C) bf16.  Single full-width lane-dense store.
    x = x_ref[0].astype(jnp.bfloat16)
    o_ref[0] = jnp.dot(x, w_ref[...],
                       preferred_element_type=jnp.float32).astype(o_ref.dtype)


def _flash_attn_kernel(q_ref, k_ref, v_ref, wproj_ref, bproj_ref, o_ref,
                       m_ref, l_ref, acc_ref, *, num_heads, head_dim, exp_dtype):
    ki = pl.program_id(2)
    nk = pl.num_programs(2)

    @pl.when(ki == 0)
    def _init():
        m_ref[...] = jnp.full_like(m_ref, -jnp.inf)
        l_ref[...] = jnp.zeros_like(l_ref)
        acc_ref[...] = jnp.zeros_like(acc_ref)

    q = q_ref[0]                      # (tq, C) bf16, 1/sqrt(D) already folded in
    k = k_ref[0]                      # (tk, C) bf16
    v = v_ref[0]                      # (tk, C) bf16
    tq = q.shape[0]
    tk = k.shape[0]

    m_prev = m_ref[...]               # (tq, H) f32
    l_prev = l_ref[...]               # (tq, H) f32
    ones_col = jnp.ones((tk, 1), dtype=v.dtype)

    m_cols, l_cols, alpha_cols, pv_cols = [], [], [], []
    for h in range(num_heads):
        sl = slice(h * head_dim, (h + 1) * head_dim)
        q_h = q[:, sl]                # (tq, D) bf16 (register slice, no store)
        k_h = k[:, sl]                # (tk, D) bf16
        # NT matmul (contract last dim of both) -- same form as the JAX
        # reference flash-attention kernel; no explicit K transpose needed.
        s = jax.lax.dot_general(q_h, k_h, (((1,), (1,)), ((), ())),
                                preferred_element_type=jnp.float32)  # (tq, tk)
        m_prev_h = m_prev[:, h:h + 1]                                 # (tq, 1)
        m_new_h = jnp.maximum(m_prev_h, jnp.max(s, axis=-1, keepdims=True))
        alpha_h = jnp.exp(m_prev_h - m_new_h)                         # (tq, 1) f32
        # exp in bf16 on v6e/v7x (EUP has bf16), f32 elsewhere.
        p = jnp.exp((s - m_new_h).astype(exp_dtype))                  # (tq, tk)
        # ones-augmented V: PV and the softmax row-sum come out of ONE MXU
        # matmul (extra output column) -> the row reduce stays off the XLU.
        v_aug = jnp.concatenate([v[:, sl], ones_col], axis=-1)        # (tk, D+1)
        o_h = jnp.dot(p.astype(v.dtype), v_aug,
                      preferred_element_type=jnp.float32)             # (tq, D+1)
        pv_cols.append(o_h[:, :head_dim])
        l_cols.append(alpha_h * l_prev[:, h:h + 1] + o_h[:, head_dim:])
        m_cols.append(m_new_h)
        alpha_cols.append(jnp.broadcast_to(alpha_h, (tq, head_dim)))

    # Lane-dense bookkeeping: exactly one store each for m, l and acc per step.
    m_ref[...] = jnp.concatenate(m_cols, axis=-1)                     # (tq, H)
    l_ref[...] = jnp.concatenate(l_cols, axis=-1)                     # (tq, H)
    alpha_full = jnp.concatenate(alpha_cols, axis=-1)                 # (tq, C)
    pv_full = jnp.concatenate(pv_cols, axis=-1)                       # (tq, C)
    acc_ref[...] = alpha_full * acc_ref[...] + pv_full                # full-width

    @pl.when(ki == nk - 1)
    def _finalize():
        # Exact reciprocal (only H*tq of them -> essentially free, tighter parity).
        inv = 1.0 / l_ref[...]                                        # (tq, H)
        inv_full = jnp.concatenate(
            [jnp.broadcast_to(inv[:, h:h + 1], (tq, head_dim))
             for h in range(num_heads)], axis=-1)                     # (tq, C)
        out = (acc_ref[...] * inv_full).astype(wproj_ref.dtype)       # bf16
        y = jnp.dot(out, wproj_ref[...], preferred_element_type=jnp.float32)
        y = y + bproj_ref[...]
        o_ref[0] = y.astype(o_ref.dtype)                              # lane-dense


def attention_forward(x, w_qkv, w_proj, b_proj, *, num_heads,
                      block_q=128, block_k=128, block_n=128,
                      single_buffer_weights=True, exp_dtype=None):
    """x: (B, N, C); w_qkv: (C, 3C); w_proj: (C, C); b_proj: (1, C).

    Tile sizes: sweep per generation -- go larger (256-512, or block_k=N) on
    v5e/v6e (128 MiB VMEM, weaker HBM); keep ~128-256 and budget VMEM on v7x
    (64 MiB per TensorCore).  Defaults are safe everywhere at these shapes.
    """
    B, N, C = x.shape
    assert C % num_heads == 0
    head_dim = C // num_heads
    scale = float(head_dim) ** -0.5
    assert C % 128 == 0, "keep channels lane-dense (multiple of 128)"
    block_q = min(block_q, N)
    block_k = min(block_k, N)
    block_n = min(block_n, N)
    assert N % block_q == 0 and N % block_k == 0 and N % block_n == 0

    if exp_dtype is None:
        exp_dtype = jnp.bfloat16 if _supports_bf16_eup() else jnp.float32

    # Fold 1/sqrt(head_dim) into the Q columns of the QKV weight on the host
    # (zero-cost; pass 1 becomes one matmul + one full-width store), then cast
    # the weights to bf16 for the MXU.  All accumulation stays f32.
    col_scale = jnp.concatenate([jnp.full((C,), scale, dtype=w_qkv.dtype),
                                 jnp.ones((2 * C,), dtype=w_qkv.dtype)])
    w_qkv_bf = (w_qkv * col_scale[None, :]).astype(jnp.bfloat16)
    w_proj_bf = w_proj.astype(jnp.bfloat16)

    def run(single_buffer):
        # Constant-index weight blocks: single-buffer them (halves weight VMEM
        # at real model widths; free here).
        wmode = {"pipeline_mode": pl.Buffered(1)} if single_buffer else {}

        # ---- Pass 1: fused QKV projection (scale folded in), bf16 output ----
        qkv = pl.pallas_call(
            _qkv_proj_kernel,
            out_shape=jax.ShapeDtypeStruct((B, N, 3 * C), jnp.bfloat16),
            grid_spec=pltpu.PrefetchScalarGridSpec(
                num_scalar_prefetch=0,
                grid=(B, N // block_n),
                in_specs=[
                    pl.BlockSpec((1, block_n, C), lambda b, n: (b, n, 0)),
                    pl.BlockSpec((C, 3 * C), lambda b, n: (0, 0), **wmode),
                ],
                out_specs=pl.BlockSpec((1, block_n, 3 * C),
                                       lambda b, n: (b, n, 0)),
            ),
            compiler_params=pltpu.CompilerParams(
                dimension_semantics=("parallel", "parallel")),
        )(x, w_qkv_bf)

        # ---- Pass 2: flash attention + fused output projection ----
        kernel = functools.partial(_flash_attn_kernel, num_heads=num_heads,
                                   head_dim=head_dim, exp_dtype=exp_dtype)
        return pl.pallas_call(
            kernel,
            out_shape=jax.ShapeDtypeStruct((B, N, C), x.dtype),
            grid_spec=pltpu.PrefetchScalarGridSpec(
                num_scalar_prefetch=0,
                grid=(B, N // block_q, N // block_k),
                in_specs=[
                    # qkv passed three times; column block index picks q/k/v.
                    pl.BlockSpec((1, block_q, C), lambda b, qi, ki: (b, qi, 0)),
                    pl.BlockSpec((1, block_k, C), lambda b, qi, ki: (b, ki, 1)),
                    pl.BlockSpec((1, block_k, C), lambda b, qi, ki: (b, ki, 2)),
                    pl.BlockSpec((C, C), lambda b, qi, ki: (0, 0), **wmode),
                    pl.BlockSpec((1, C), lambda b, qi, ki: (0, 0), **wmode),
                ],
                out_specs=pl.BlockSpec((1, block_q, C),
                                       lambda b, qi, ki: (b, qi, 0)),
                scratch_shapes=[
                    pltpu.VMEM((block_q, num_heads), jnp.float32),  # m (run. max)
                    pltpu.VMEM((block_q, num_heads), jnp.float32),  # l (run. sum)
                    pltpu.VMEM((block_q, C), jnp.float32),          # acc
                ],
            ),
            compiler_params=pltpu.CompilerParams(
                dimension_semantics=("parallel", "parallel", "arbitrary")),
        )(qkv, qkv, qkv, w_proj_bf, b_proj)

    if single_buffer_weights:
        try:
            return run(True)
        except Exception:
            # pl.Buffered(1) on constant weight blocks unsupported on this
            # jax version -> fall back to default double buffering.
            pass
    return run(False)
    # TODO(synk): return_attention=True path not supported -- the flash-style
    # kernel never materializes the (B, H, N, N) attention tensor.


def attention_reference(x, w_qkv, w_proj, b_proj, *, num_heads):
    B, N, C = x.shape
    D = C // num_heads
    qkv = x @ w_qkv                                           # (B, N, 3C)
    qkv = qkv.reshape(B, N, 3, num_heads, D).transpose(2, 0, 3, 1, 4)
    q, k, v = qkv[0], qkv[1], qkv[2]                          # (B, H, N, D)
    attn = (q @ jnp.swapaxes(k, -2, -1)) * (D ** -0.5)
    attn = jax.nn.softmax(attn, axis=-1)
    out = (attn @ v).transpose(0, 2, 1, 3).reshape(B, N, C)
    return out @ w_proj + b_proj[0]


if __name__ == "__main__":
    # Small but lane-dense / tile-aligned shapes: C multiple of 128, N = 2 tiles
    # so the online-softmax kv loop is actually exercised.
    B, N, C, num_heads = 2, 256, 128, 8   # head_dim = 16

    key = jax.random.PRNGKey(0)
    kx, kq, kp, kb = jax.random.split(key, 4)
    x = jax.random.normal(kx, (B, N, C), dtype=jnp.float32)
    # nn.Linear(dim, dim*3, bias=False): weight (3C, C); pre-transposed -> (C, 3C)
    w_qkv = jax.random.normal(kq, (C, 3 * C), dtype=jnp.float32) * 0.05
    # nn.Linear(dim, dim): weight (C, C) + bias (C,); pre-transposed -> (C, C)
    w_proj = jax.random.normal(kp, (C, C), dtype=jnp.float32) * 0.05
    b_proj = jax.random.normal(kb, (1, C), dtype=jnp.float32) * 0.05

    y = attention_forward(x, w_qkv, w_proj, b_proj, num_heads=num_heads)
    y = jax.block_until_ready(y)

    y_ref = attention_reference(x, w_qkv, w_proj, b_proj, num_heads=num_heads)
    # bf16 MXU inputs (and bf16 exp on v6e/v7x) vs a pure-f32 reference =>
    # looser tolerance than f32-vs-f32.
    max_diff = float(jnp.max(jnp.abs(y - y_ref)))
    assert jnp.allclose(y, y_ref, atol=2.5e-2, rtol=2.5e-2), (
        "mismatch vs reference; max |diff| = %g" % max_diff)

    print("KERNEL_OK")
</pallas_src>

<mosaic_0001>
module attributes {stable_mosaic.version = 11 : i64} {
  func.func @_qkv_proj_kernel(%arg0: i32, %arg1: i32, %arg2: memref<1x128x128xf32, #tpu.memory_space<vmem>>, %arg3: memref<128x384xbf16, #tpu.memory_space<vmem>>, %arg4: memref<1x128x384xbf16, #tpu.memory_space<vmem>>) attributes {dimension_semantics = [#tpu.dimension_semantics<parallel>, #tpu.dimension_semantics<parallel>], iteration_bounds = array<i64: 2, 2>, scalar_prefetch = 0 : i64, scratch_operands = 0 : i64, tpu.core_type = #tpu.core_type<tc>, window_params = [{transform_indices = @transform_0, window_bounds = array<i64: 1, 128, 128>}, {pipeline_mode = #tpu.pipeline_mode<synchronous>, transform_indices = @transform_1, window_bounds = array<i64: 128, 384>}, {transform_indices = @transform_2, window_bounds = array<i64: 1, 128, 384>}]} {
    %c0 = arith.constant 0 : index
    %c0_0 = arith.constant 0 : index
    %c0_1 = arith.constant 0 : index
    %0 = vector.load %arg2[%c0, %c0_0, %c0_1] : memref<1x128x128xf32, #tpu.memory_space<vmem>>, vector<1x128x128xf32>
    %1 = vector.shape_cast %0 : vector<1x128x128xf32> to vector<128x128xf32>
    %2 = arith.truncf %1 : vector<128x128xf32> to vector<128x128xbf16>
    %c0_2 = arith.constant 0 : index
    %c0_3 = arith.constant 0 : index
    %3 = vector.load %arg3[%c0_2, %c0_3] : memref<128x384xbf16, #tpu.memory_space<vmem>>, vector<128x384xbf16>
    %cst = arith.constant dense<0.000000e+00> : vector<128x384xf32>
    %4 = tpu.matmul %2, %3, %cst {dimension_numbers = #tpu.dot_dimension_numbers<[1], [0], [0], [1], [0, 0, 1, 1], [], []>} : vector<128x128xbf16>, vector<128x384xbf16>, vector<128x384xf32> -> vector<128x384xf32>
    %5 = arith.truncf %4 : vector<128x384xf32> to vector<128x384xbf16>
    %c0_4 = arith.constant 0 : index
    %c0_5 = arith.constant 0 : index
    %c0_6 = arith.constant 0 : index
    %6 = vector.load %arg4[%c0_4, %c0_5, %c0_6] : memref<1x128x384xbf16, #tpu.memory_space<vmem>>, vector<1x128x384xbf16>
    %7 = vector.shape_cast %6 : vector<1x128x384xbf16> to vector<128x384xbf16>
    %8 = vector.shape_cast %5 : vector<128x384xbf16> to vector<1x128x384xbf16>
    tpu.vector_store %arg4[%c0_4, %c0_5, %c0_6], %8 {strides = array<i32>} : memref<1x128x384xbf16, #tpu.memory_space<vmem>>, vector<1x128x384xbf16>,
    return
  }
  func.func @transform_0(%arg0: i32, %arg1: i32) -> (i32, i32, i32) {
    %c0_i32 = arith.constant 0 : i32
    %c0_i32_0 = arith.constant 0 : i32
    return %arg0, %arg1, %c0_i32 : i32, i32, i32
  }
  func.func @transform_1(%arg0: i32, %arg1: i32) -> (i32, i32) {
    %c0_i32 = arith.constant 0 : i32
    %c0_i32_0 = arith.constant 0 : i32
    %c0_i32_1 = arith.constant 0 : i32
    return %c0_i32, %c0_i32_0 : i32, i32
  }
  func.func @transform_2(%arg0: i32, %arg1: i32) -> (i32, i32, i32) {
    %c0_i32 = arith.constant 0 : i32
    %c0_i32_0 = arith.constant 0 : i32
    return %arg0, %arg1, %c0_i32 : i32, i32, i32
  }
}

module attributes {stable_mosaic.version = 11 : i64} {
  func.func @_qkv_proj_kernel(%arg0: i32, %arg1: i32, %arg2: memref<1x128x128xf32, #tpu.memory_space<vmem>>, %arg3: memref<128x384xbf16, #tpu.memory_space<vmem>>, %arg4: memref<1x128x384xbf16, #tpu.memory_space<vmem>>) attributes {dimension_semantics = [#tpu.dimension_semantics<parallel>, #tpu.dimension_semantics<parallel>], iteration_bounds = array<i64: 2, 2>, scalar_prefetch = 0 : i64, scratch_operands = 0 : i64, tpu.core_type = #tpu.core_type<tc>, window_params = [{transform_indices = @transform_0, window_bounds = array<i64: 1, 128, 128>}, {pipeline_mode = #tpu.pipeline_mode<synchronous>, transform_indices = @transform_1, window_bounds = array<i64: 128, 384>}, {transform_indices = @transform_2, window_bounds = array<i64: 1, 128, 384>}]} {
    %c0 = arith.constant 0 : index
    %c0_0 = arith.constant 0 : index
    %c0_1 = arith.constant 0 : index
    %0 = vector.load %arg2[%c0, %c0_0, %c0_1] : memref<1x128x128xf32, #tpu.memory_space<vmem>>, vector<1x128x128xf32>
    %1 = vector.shape_cast %0 : vector<1x128x128xf32> to vector<128x128xf32>
    %2 = arith.truncf %1 : vector<128x128xf32> to vector<128x128xbf16>
    %c0_2 = arith.constant 0 : index
    %c0_3 = arith.constant 0 : index
    %3 = vector.load %arg3[%c0_2, %c0_3] : memref<128x384xbf16, #tpu.memory_space<vmem>>, vector<128x384xbf16>
    %cst = arith.constant dense<0.000000e+00> : vector<128x384xf32>
    %4 = tpu.matmul %2, %3, %cst {dimension_numbers = #tpu.dot_dimension_numbers<[1], [0], [0], [1], [0, 0, 1, 1], [], []>} : vector<128x128xbf16>, vector<128x384xbf16>, vector<128x384xf32> -> vector<128x384xf32>
    %5 = arith.truncf %4 : vector<128x384xf32> to vector<128x384xbf16>
    %c0_4 = arith.constant 0 : index
    %c0_5 = arith.constant 0 : index
    %c0_6 = arith.constant 0 : index
    %6 = vector.load %arg4[%c0_4, %c0_5, %c0_6] : memref<1x128x384xbf16, #tpu.memory_space<vmem>>, vector<1x128x384xbf16>
    %7 = vector.shape_cast %6 : vector<1x128x384xbf16> to vector<128x384xbf16>
    %8 = vector.shape_cast %5 : vector<128x384xbf16> to vector<1x128x384xbf16>
    tpu.vector_store %arg4[%c0_4, %c0_5, %c0_6], %8 {strides = array<i32>} : memref<1x128x384xbf16, #tpu.memory_space<vmem>>, vector<1x128x384xbf16>,
    return
  }
  func.func @transform_0(%arg0: i32, %arg1: i32) -> (i32, i32, i32) {
    %c0_i32 = arith.constant 0 : i32
    %c0_i32_0 = arith.constant 0 : i32
    return %arg0, %arg1, %c0_i32 : i32, i32, i32
  }
  func.func @transform_1(%arg0: i32, %arg1: i32) -> (i32, i32) {
    %c0_i32 = arith.constant 0 : i32
    %c0_i32_0 = arith.constant 0 : i32
    %c0_i32_1 = arith.constant 0 : i32
    return %c0_i32, %c0_i32_0 : i32, i32
  }
  func.func @transform_2(%arg0: i32, %arg1: i32) -> (i32, i32, i32) {
    %c0_i32 = arith.constant 0 : i32
    %c0_i32_0 = arith.constant 0 : i32
    return %arg0, %arg1, %c0_i32 : i32, i32, i32
  }
}

</mosaic_0001>

<llo_original>
// kernel: tpu_custom_call.1
$region0: #{tpu_custom_call.1}
  #allocation0 [shape = 'u32[]', space=smem, size = 0x4, offset = 0x4, fixed_abs, tag = 'smem constant byte address 0x4 - core index']
  #allocation1 [shape = 'u32[144,128]{1,0:T(1,128)}', space=vmem, size = 0x12000, scoped, tag = 'internal scratch']
  %s0 = inlined_call_operand.hbm [shape: f32[2,256,128], index: 0, kind: input, shape index: {}]
  %s1 = inlined_call_operand.hbm [shape: bf16[128,384], index: 1, kind: input, shape index: {}]
  %s2 = inlined_call_operand.hbm [shape: bf16[2,256,384], index: 2, kind: output, shape index: {}]
  %s3 = sld [smem:[#allocation0]]
  $region49: #{tpu_custom_call.1} parent=0
    _
  %s5 = ssub.s32 1, %s3
  %s6 = scalar_select 0, %s5, %s3
  $region1: #{tpu_custom_call.1} parent=0
    #allocation2 [shape = 'u8[131072]{0}', space=vmem, size = 0x20000, scoped, tag = 'input window, operand 0']
    #allocation3 [shape = 's32[2]{0}', space=sflag, size = 0x8, scoped, tag = 'scoped memory for tpu_custom_call.1']
    #allocation4 [shape = 's32[2]{0}', space=sflag, size = 0x8, scoped, tag = 'scoped memory for tpu_custom_call.1']
    #allocation5 [shape = 'u8[98304]{0}', space=vmem, size = 0x18000, scoped, tag = 'input window, operand 1, single buffered']
    #allocation6 [shape = 's32[1]{0}', space=sflag, size = 0x4, scoped, tag = 'scoped memory for tpu_custom_call.1']
    #allocation7 [shape = 'u8[196608]{0}', space=vmem, size = 0x30000, scoped, tag = 'output window, operand 0']
    %7 = vsyncpa [#allocation3], 0
    %s8 = scalar_lea.sflag [#allocation3], 1
    %9 = vsyncpa %s8, 0
    %10 = vsyncpa [#allocation6], 0
    %11 = vsyncpa [#allocation4], 0
    %s12 = scalar_lea.sflag [#allocation4], 1
    %13 = vsyncpa %s12, 0
    loop: start=0, step=1, limit=6
    $region2: #{tpu_custom_call.1} parent=1 // loop_pre_header
      _
    $region3: #{tpu_custom_call.1} parent=1 // loop_header
      %s15 = sphi 0, %s19
      %p16 = scmp.ge.s32.totalorder %s15, 6
      %s22 = sphi 0, %s34
      %s23 = sphi 0, %s30
      %s24 = sphi 0, %s22
      %s25 = sphi 0, %s23
      %s26 = sphi 0, %s24
      %s27 = sphi 0, %s25
      %s39 = sphi 0, %s41
      %s42 = sphi 0, %s39
      %s43 = sphi 0, %s42
      %s59 = sphi 0, %s43
      %s63 = sphi 0, %s63
      %s65 = sphi 0, %s63
      %s66 = sphi 0, %s65
      %s80 = sphi 0, %s66
      %s88 = sphi 0, %s90
      %s91 = sphi 0, %s88
      %s92 = sphi 0, %s91
      %s108 = sphi 0, %s92
    $region4: #{tpu_custom_call.1} parent=1 // loop_header_branch
      %18 = sbr.rel (%p16) target = $region8
    $region5: #{tpu_custom_call.1} parent=1 // loop_body
      %s20 = ssub.s32 %s15, 1
      %s21 = ssub.s32 %s15, 2
      %s28 = sadd.s32 1, %s23
      %p29 = scmp.ge.s32.totalorder %s28, 2
      %s30 = scalar_select %p29, 0, %s28
      %s31 = sadd.s32 1, %s22
      %s32 = scalar_select %p29, %s31, %s22
      %p33 = scmp.ge.s32.totalorder %s32, 2
      %s34 = scalar_select %p33, 0, %s32
      %s35 = ssub.s32 %s22, %s34
      %s36 = ssub.s32 %s23, %s30
      %s37 = sor.u32 %s35, %s36
      %p38 = scmp.eq.s32.totalorder %s37, 0
      %s40 = sadd.s32 %s39, 1
      %s41 = scalar_select %p38, %s39, %s40
      %p44 = pneg %p38
      %p45 = scmp.eq.s32.totalorder %s15, 3
      %p46 = por %p44, %p45
      %p47 = scmp.ne.s32.totalorder %s39, %s42
      %p48 = scmp.eq.s32.totalorder %s15, 0
      %p49 = por %p47, %p48
      %p50 = scmp.ne.s32.totalorder %s39, %s42
      %p51 = scmp.eq.s32.totalorder %s20, 3
      %p52 = por %p50, %p51
      %p53 = scmp.ne.s32.totalorder %s42, %s43
      %p54 = scmp.eq.s32.totalorder %s20, 0
      %p55 = por %p53, %p54
      %p56 = scmp.ne.s32.totalorder %s42, %s43
      %p57 = scmp.eq.s32.totalorder %s21, 3
      %p58 = por %p56, %p57
      %p60 = scmp.ne.s32.totalorder %s43, %s59
      %p61 = scmp.eq.s32.totalorder %s21, 0
      %p62 = por %p60, %p61
      %s64 = sadd.s32 %s63, 1
      %p67 = scmp.eq.s32.totalorder %s15, 3
      %p68 = scmp.ne.s32.totalorder %s63, %s65
      %p69 = scmp.eq.s32.totalorder %s15, 0
      %p70 = por %p68, %p69
      %p71 = scmp.ne.s32.totalorder %s63, %s65
      %p72 = scmp.eq.s32.totalorder %s20, 3
      %p73 = por %p71, %p72
      %p74 = scmp.ne.s32.totalorder %s65, %s66
      %p75 = scmp.eq.s32.totalorder %s20, 0
      %p76 = por %p74, %p75
      %p77 = scmp.ne.s32.totalorder %s65, %s66
      %p78 = scmp.eq.s32.totalorder %s21, 3
      %p79 = por %p77, %p78
      %p81 = scmp.ne.s32.totalorder %s66, %s80
      %p82 = scmp.eq.s32.totalorder %s21, 0
      %p83 = por %p81, %p82
      %s84 = ssub.s32 %s22, %s34
      %s85 = ssub.s32 %s23, %s30
      %s86 = sor.u32 %s84, %s85
      %p87 = scmp.eq.s32.totalorder %s86, 0
      %s89 = sadd.s32 %s88, 1
      %s90 = scalar_select %p87, %s88, %s89
      %p93 = pneg %p87
      %p94 = scmp.eq.s32.totalorder %s15, 3
      %p95 = por %p93, %p94
      %p96 = scmp.ne.s32.totalorder %s88, %s91
      %p97 = scmp.eq.s32.totalorder %s15, 0
      %p98 = por %p96, %p97
      %p99 = scmp.ne.s32.totalorder %s88, %s91
      %p100 = scmp.eq.s32.totalorder %s20, 3
      %p101 = por %p99, %p100
      %p102 = scmp.ne.s32.totalorder %s91, %s92
      %p103 = scmp.eq.s32.totalorder %s20, 0
      %p104 = por %p102, %p103
      %p105 = scmp.ne.s32.totalorder %s91, %s92
      %p106 = scmp.eq.s32.totalorder %s21, 3
      %p107 = por %p105, %p106
      %p109 = scmp.ne.s32.totalorder %s92, %s108
      %p110 = scmp.eq.s32.totalorder %s21, 0
      %p111 = por %p109, %p110
      %p112 = scmp.le.s32.totalorder 1, %s15
      %p113 = scmp.lt.s32.totalorder %s15, 5
      %p114 = pnand %p112, %p113
      %p115 = pneg %p114
      // Predicated region
      $region9: #{tpu_custom_call.1} parent=5 // pred_check
        _
      $region10: #{tpu_custom_call.1} parent=5 // pred_check_branch
        %117 = sbr.rel (%p114) target = $region12
      $region11: #{tpu_custom_call.1} parent=5 // pred_region
        %s118 = ssub.s32 %s15, 1
        // Predicated region
        $region13: #{tpu_custom_call.1} parent=11 // pred_check
          %p119 = pneg %p76
        $region14: #{tpu_custom_call.1} parent=11 // pred_check_branch
          %121 = sbr.rel (%p119) target = $region16
        $region15: #{tpu_custom_call.1} parent=11 // pred_region
          %s123 = ssub.s32 3072, 3072
          %124 = vsyncadd [#allocation6], %s123
          %s125 = sshll.u32 [#allocation5], 4
          %s126 = int_to_ptr.vmem [resolvable:$true] %s125
          %131 = dma.hbm_to_vmem [thread:$0]  %s1, 3072, %s126, [#allocation6], 192, 192, 12
        $region16: #{tpu_custom_call.1} parent=11 // pred_fallthru
          _
      $region12: #{tpu_custom_call.1} parent=5 // pred_fallthru
        _
      %p132 = scmp.lt.s32.totalorder %s15, 4
      // Predicated region
      $region17: #{tpu_custom_call.1} parent=5 // pred_check
        %p133 = pneg %p132
      $region18: #{tpu_custom_call.1} parent=5 // pred_check_branch
        %135 = sbr.rel (%p133) target = $region20
      $region19: #{tpu_custom_call.1} parent=5 // pred_region
        // Predicated region
        $region21: #{tpu_custom_call.1} parent=19 // pred_check
          %p136 = pneg %p49
        $region22: #{tpu_custom_call.1} parent=19 // pred_check_branch
          %138 = sbr.rel (%p136) target = $region24
        $region23: #{tpu_custom_call.1} parent=19 // pred_region
          %s139 = sand.u32 %s39, 1
          %s140 = scalar_lea.sflag [#allocation3], %s139
          %s141 = sand.u32 %s39, 1
          %s142 = smul.addr %s141, 128
          %s143 = scalar_lea.vmem [#allocation2], %s142
          %s144 = smul.u32 16, %s23
          %s146 = ssub.s32 2048, 2048
          %147 = vsyncadd %s140, %s146
          %s148 = smul.addr %s22, 32
          %s149 = sadd.s32 %s144, %s148
          %s150 = smul.addr %s149, 128
          %s151 = scalar_lea.hbm %s0, %s150
          %s152 = sshll.u32 %s143, 4
          %s153 = int_to_ptr.vmem [resolvable:$true] %s152
          %158 = dma.hbm_to_vmem [thread:$0]  %s151, 2048, %s153, %s140, 128, 128, 8
        $region24: #{tpu_custom_call.1} parent=19 // pred_fallthru
          _
      $region20: #{tpu_custom_call.1} parent=5 // pred_fallthru
        _
      %p159 = scmp.le.s32.totalorder 1, %s15
      %p160 = scmp.lt.s32.totalorder %s15, 5
      %p161 = pnand %p159, %p160
      %p162 = pneg %p161
      // Predicated region
      $region25: #{tpu_custom_call.1} parent=5 // pred_check
        _
      $region26: #{tpu_custom_call.1} parent=5 // pred_check_branch
        %164 = sbr.rel (%p161) target = $region28
      $region27: #{tpu_custom_call.1} parent=5 // pred_region
        %s165 = ssub.s32 %s15, 1
        %s166 = sand.u32 %s42, 1
        %s167 = scalar_lea.sflag [#allocation3], %s166
        %s168 = sand.u32 %s42, 1
        %s169 = smul.addr %s168, 128
        %s170 = scalar_lea.vmem [#allocation2], %s169
        // Predicated region
        $region29: #{tpu_custom_call.1} parent=27 // pred_check
          %p171 = pneg %p55
        $region30: #{tpu_custom_call.1} parent=27 // pred_check_branch
          %173 = sbr.rel (%p171) target = $region32
        $region31: #{tpu_custom_call.1} parent=27 // pred_region
          %174 = dma.done %s167, 2048
        $region32: #{tpu_custom_call.1} parent=27 // pred_fallthru
          _
        // Predicated region
        $region33: #{tpu_custom_call.1} parent=27 // pred_check
          %p175 = pneg %p76
        $region34: #{tpu_custom_call.1} parent=27 // pred_check_branch
          %177 = sbr.rel (%p175) target = $region36
        $region35: #{tpu_custom_call.1} parent=27 // pred_region
          %178 = dma.done [#allocation6], 3072
        $region36: #{tpu_custom_call.1} parent=27 // pred_fallthru
          _
        %s179 = sand.u32 %s42, 1
        %s180 = scalar_lea.sflag [#allocation3], %s179
        %s181 = sand.u32 %s42, 1
        %s182 = smul.addr %s181, 128
        %s183 = scalar_lea.vmem [#allocation2], %s182
        %p184 = pneg %p55
        %p185 = pneg %p52
        %p186 = pneg %p76
        %p187 = pneg %p73
        %p188 = pneg %p104
        %p189 = pneg %p101
        %s190 = sand.u32 %s91, 1
        %s191 = scalar_lea.sflag [#allocation4], %s190
        %s192 = sand.u32 %s91, 1
        %s193 = smul.addr %s192, 192
        %s194 = scalar_lea.vmem [#allocation7], %s193
        %s195 = smul.u32 16, %s25
        %s196 = smul.u32 16, %s25
        %v198 = vld [vmem:[%s170] sm:$0xff]
        %v199 = vld [vmem:[%s170 + $0x8] sm:$0xff]
        %v200 = vld [vmem:[%s170 + $0x10] sm:$0xff]
        %v201 = vld [vmem:[%s170 + $0x18] sm:$0xff]
        %v202 = vld [vmem:[%s170 + $0x20] sm:$0xff]
        %v203 = vld [vmem:[%s170 + $0x28] sm:$0xff]
        %v204 = vld [vmem:[%s170 + $0x30] sm:$0xff]
        %v205 = vld [vmem:[%s170 + $0x38] sm:$0xff]
        %v206 = vld [vmem:[%s170 + $0x40] sm:$0xff]
        %v207 = vld [vmem:[%s170 + $0x48] sm:$0xff]
        %v208 = vld [vmem:[%s170 + $0x50] sm:$0xff]
        %v209 = vld [vmem:[%s170 + $0x58] sm:$0xff]
        %v210 = vld [vmem:[%s170 + $0x60] sm:$0xff]
        %v211 = vld [vmem:[%s170 + $0x68] sm:$0xff]
        %v212 = vld [vmem:[%s170 + $0x70] sm:$0xff]
        %v213 = vld [vmem:[%s170 + $0x78] sm:$0xff]
        %v214 = vpack.c.bf16 %v199, %v198
        %v215 = vpack.c.bf16 %v201, %v200
        %v216 = vpack.c.bf16 %v203, %v202
        %v217 = vpack.c.bf16 %v205, %v204
        %v218 = vpack.c.bf16 %v207, %v206
        %v219 = vpack.c.bf16 %v209, %v208
        %v220 = vpack.c.bf16 %v211, %v210
        %v221 = vpack.c.bf16 %v213, %v212
        %v222 = vld [vmem:[#allocation5] sm:$0xff]
        %v223 = vld [vmem:[#allocation5 + $0x8] sm:$0xf]
        %v224 = vld [vmem:[#allocation5 + $0xc] sm:$0xff]
        %v225 = vld [vmem:[#allocation5 + $0x14] sm:$0xf]
        %v226 = vld [vmem:[#allocation5 + $0x18] sm:$0xff]
        %v227 = vld [vmem:[#allocation5 + $0x20] sm:$0xf]
        %v228 = vld [vmem:[#allocation5 + $0x24] sm:$0xff]
        %v229 = vld [vmem:[#allocation5 + $0x2c] sm:$0xf]
        %v230 = vld [vmem:[#allocation5 + $0x30] sm:$0xff]
        %v231 = vld [vmem:[#allocation5 + $0x38] sm:$0xf]
        %v232 = vld [vmem:[#allocation5 + $0x3c] sm:$0xff]
        %v233 = vld [vmem:[#allocation5 + $0x44] sm:$0xf]
        %v234 = vld [vmem:[#allocation5 + $0x48] sm:$0xff]
        %v235 = vld [vmem:[#allocation5 + $0x50] sm:$0xf]
        %v236 = vld [vmem:[#allocation5 + $0x54] sm:$0xff]
        %v237 = vld [vmem:[#allocation5 + $0x5c] sm:$0xf]
        %v238 = vld [vmem:[#allocation5 + $0x60] sm:$0xff]
        %v239 = vld [vmem:[#allocation5 + $0x68] sm:$0xf]
        %v240 = vld [vmem:[#allocation5 + $0x6c] sm:$0xff]
        %v241 = vld [vmem:[#allocation5 + $0x74] sm:$0xf]
        %v242 = vld [vmem:[#allocation5 + $0x78] sm:$0xff]
        %v243 = vld [vmem:[#allocation5 + $0x80] sm:$0xf]
        %v244 = vld [vmem:[#allocation5 + $0x84] sm:$0xff]
        %v245 = vld [vmem:[#allocation5 + $0x8c] sm:$0xf]
        %v246 = vld [vmem:[#allocation5 + $0x90] sm:$0xff]
        %v247 = vld [vmem:[#allocation5 + $0x98] sm:$0xf]
        %v248 = vld [vmem:[#allocation5 + $0x9c] sm:$0xff]
        %v249 = vld [vmem:[#allocation5 + $0xa4] sm:$0xf]
        %v250 = vld [vmem:[#allocation5 + $0xa8] sm:$0xff]
        %v251 = vld [vmem:[#allocation5 + $0xb0] sm:$0xf]
        %v252 = vld [vmem:[#allocation5 + $0xb4] sm:$0xff]
        %v253 = vld [vmem:[#allocation5 + $0xbc] sm:$0xf]
        %v286 = vunpack.c.l.b16 %v222
        %v287 = vunpack.c.h.b16 %v222
        %v288 = vunpack.c.l.b16 %v223
        %v289 = vunpack.c.l.b16 %v224
        %v290 = vunpack.c.h.b16 %v224
        %v291 = vunpack.c.l.b16 %v225
        %v292 = vunpack.c.l.b16 %v226
        %v293 = vunpack.c.h.b16 %v226
        %v294 = vunpack.c.l.b16 %v227
        %v295 = vunpack.c.l.b16 %v228
        %v296 = vunpack.c.h.b16 %v228
        %v297 = vunpack.c.l.b16 %v229
        %v298 = vunpack.c.l.b16 %v230
        %v299 = vunpack.c.h.b16 %v230
        %v300 = vunpack.c.l.b16 %v231
        %v301 = vunpack.c.l.b16 %v232
        %v302 = vunpack.c.h.b16 %v232
        %v303 = vunpack.c.l.b16 %v233
        %v304 = vunpack.c.l.b16 %v234
        %v305 = vunpack.c.h.b16 %v234
        %v306 = vunpack.c.l.b16 %v235
        %v307 = vunpack.c.l.b16 %v236
        %v308 = vunpack.c.h.b16 %v236
        %v309 = vunpack.c.l.b16 %v237
        %v310 = vunpack.c.l.b16 %v238
        %v311 = vunpack.c.h.b16 %v238
        %v312 = vunpack.c.l.b16 %v239
        %v313 = vunpack.c.l.b16 %v240
        %v314 = vunpack.c.h.b16 %v240
        %v315 = vunpack.c.l.b16 %v241
        %v316 = vunpack.c.l.b16 %v242
        %v317 = vunpack.c.h.b16 %v242
        %v318 = vunpack.c.l.b16 %v243
        %v319 = vunpack.c.l.b16 %v244
        %v320 = vunpack.c.h.b16 %v244
        %v321 = vunpack.c.l.b16 %v245
        %v322 = vunpack.c.l.b16 %v246
        %v323 = vunpack.c.h.b16 %v246
        %v324 = vunpack.c.l.b16 %v247
        %v325 = vunpack.c.l.b16 %v248
        %v326 = vunpack.c.h.b16 %v248
        %v327 = vunpack.c.l.b16 %v249
        %v328 = vunpack.c.l.b16 %v250
        %v329 = vunpack.c.h.b16 %v250
        %v330 = vunpack.c.l.b16 %v251
        %v331 = vunpack.c.l.b16 %v252
        %v332 = vunpack.c.h.b16 %v252
        %v333 = vunpack.c.l.b16 %v253
        %v334 = vpack.c.b16 %v289, %v286
        %v335 = vpack.c.b16 %v290, %v287
        %v336 = vpack.c.b16 %v291, %v288
        %v337 = vpack.c.b16 %v295, %v292
        %v338 = vpack.c.b16 %v296, %v293
        %v339 = vpack.c.b16 %v297, %v294
        %v340 = vpack.c.b16 %v301, %v298
        %v341 = vpack.c.b16 %v302, %v299
        %v342 = vpack.c.b16 %v303, %v300
        %v343 = vpack.c.b16 %v307, %v304
        %v344 = vpack.c.b16 %v308, %v305
        %v345 = vpack.c.b16 %v309, %v306
        %v346 = vpack.c.b16 %v313, %v310
        %v347 = vpack.c.b16 %v314, %v311
        %v348 = vpack.c.b16 %v315, %v312
        %v349 = vpack.c.b16 %v319, %v316
        %v350 = vpack.c.b16 %v320, %v317
        %v351 = vpack.c.b16 %v321, %v318
        %v352 = vpack.c.b16 %v325, %v322
        %v353 = vpack.c.b16 %v326, %v323
        %v354 = vpack.c.b16 %v327, %v324
        %v355 = vpack.c.b16 %v331, %v328
        %v356 = vpack.c.b16 %v332, %v329
        %v357 = vpack.c.b16 %v333, %v330
        %382 = vmatprep.subr.bf16.mxu0 %v356
        %383 = vmatpush1.bf16.msra.mxu0 %v355
        %384 = vmatprep.subr.bf16.mxu0 %v353
        %385 = vmatpush1.bf16.msra.mxu0 %v352
        %386 = vmatprep.subr.bf16.mxu0 %v350
        %387 = vmatpush1.bf16.msra.mxu0 %v349
        %388 = vmatprep.subr.bf16.mxu0 %v347
        %389 = vmatpush1.bf16.msra.mxu0 %v346
        %390 = vmatprep.subr.bf16.mxu0 %v344
        %391 = vmatpush1.bf16.msra.mxu0 %v343
        %392 = vmatprep.subr.bf16.mxu0 %v341
        %393 = vmatpush1.bf16.msra.mxu0 %v340
        %394 = vmatprep.subr.bf16.mxu0 %v338
        %395 = vmatpush1.bf16.msra.mxu0 %v337
        %396 = vmatprep.subr.bf16.mxu0 %v335
        %397 = vmatpush1.bf16.msra.mxu0 %v334
        %398 = vmatprep.subr.bf16.mxu0 0
        %399 = vmatpush2.bf16.msra.mxu0 0
        %400 = vmatprep.subr.bf16.mxu0 0
        %401 = vmatpush2.bf16.msra.mxu0 0
        %402 = vmatprep.subr.bf16.mxu0 0
        %403 = vmatpush2.bf16.msra.mxu0 0
        %404 = vmatprep.subr.bf16.mxu0 0
        %405 = vmatpush2.bf16.msra.mxu0 0
        %406 = vmatprep.subr.bf16.mxu0 0
        %407 = vmatpush2.bf16.msra.mxu0 0
        %408 = vmatprep.subr.bf16.mxu0 0
        %409 = vmatpush2.bf16.msra.mxu0 0
        %410 = vmatprep.subr.bf16.mxu0 0
        %411 = vmatpush2.bf16.msra.mxu0 0
        %412 = vmatprep.subr.bf16.mxu0 0
        %413 = vmatpush2.bf16.msra.mxu0 0
        %414 = vmatprep.mubr.bf16.mxu0 0
        %415 = vmatmul.mubr.bf16.gmra.mxu0 %v214
        %v416 = vpop.f32.mrf.mxu0
        %v417 = vadd.f32 0.0, %v416
        %v418 = vpop.f32.mrf.mxu0
        %v419 = vadd.f32 0.0, %v418
        %v420 = vpop.f32.mrf.mxu0
        %v421 = vadd.f32 0.0, %v420
        %v422 = vpop.f32.mrf.mxu0
        %v423 = vadd.f32 0.0, %v422
        %424 = vmatprep.mubr.bf16.mxu0 0
        %425 = vmatmul.mubr.bf16.gmra.mxu0 %v215
        %v426 = vpop.f32.mrf.mxu0
        %v427 = vadd.f32 0.0, %v426
        %v428 = vpop.f32.mrf.mxu0
        %v429 = vadd.f32 0.0, %v428
        %v430 = vpop.f32.mrf.mxu0
        %v431 = vadd.f32 0.0, %v430
        %v432 = vpop.f32.mrf.mxu0
        %v433 = vadd.f32 0.0, %v432
        %434 = vmatprep.mubr.bf16.mxu0 0
        %435 = vmatmul.mubr.bf16.gmra.mxu0 %v216
        %v436 = vpop.f32.mrf.mxu0
        %v437 = vadd.f32 0.0, %v436
        %v438 = vpop.f32.mrf.mxu0
        %v439 = vadd.f32 0.0, %v438
        %v440 = vpop.f32.mrf.mxu0
        %v441 = vadd.f32 0.0, %v440
        %v442 = vpop.f32.mrf.mxu0
        %v443 = vadd.f32 0.0, %v442
        %444 = vmatprep.mubr.bf16.mxu0 0
        %445 = vmatmul.mubr.bf16.gmra.mxu0 %v217
        %v446 = vpop.f32.mrf.mxu0
        %v447 = vadd.f32 0.0, %v446
        %v448 = vpop.f32.mrf.mxu0
        %v449 = vadd.f32 0.0, %v448
        %v450 = vpop.f32.mrf.mxu0
        %v451 = vadd.f32 0.0, %v450
        %v452 = vpop.f32.mrf.mxu0
        %v453 = vadd.f32 0.0, %v452
        %454 = vmatprep.mubr.bf16.mxu0 0
        %455 = vmatmul.mubr.bf16.gmra.mxu0 %v218
        %v456 = vpop.f32.mrf.mxu0
        %v457 = vadd.f32 0.0, %v456
        %v458 = vpop.f32.mrf.mxu0
        %v459 = vadd.f32 0.0, %v458
        %v460 = vpop.f32.mrf.mxu0
        %v461 = vadd.f32 0.0, %v460
        %v462 = vpop.f32.mrf.mxu0
        %v463 = vadd.f32 0.0, %v462
        %464 = vmatprep.mubr.bf16.mxu0 0
        %465 = vmatmul.mubr.bf16.gmra.mxu0 %v219
        %v466 = vpop.f32.mrf.mxu0
        %v467 = vadd.f32 0.0, %v466
        %v468 = vpop.f32.mrf.mxu0
        %v469 = vadd.f32 0.0, %v468
        %v470 = vpop.f32.mrf.mxu0
        %v471 = vadd.f32 0.0, %v470
        %v472 = vpop.f32.mrf.mxu0
        %v473 = vadd.f32 0.0, %v472
        %474 = vmatprep.mubr.bf16.mxu0 0
        %475 = vmatmul.mubr.bf16.gmra.mxu0 %v220
        %v476 = vpop.f32.mrf.mxu0
        %v477 = vadd.f32 0.0, %v476
        %v478 = vpop.f32.mrf.mxu0
        %v479 = vadd.f32 0.0, %v478
        %v480 = vpop.f32.mrf.mxu0
        %v481 = vadd.f32 0.0, %v480
        %v482 = vpop.f32.mrf.mxu0
        %v483 = vadd.f32 0.0, %v482
        %484 = vmatprep.mubr.bf16.mxu0 0
        %485 = vmatmul.mubr.bf16.gmra.mxu0 %v221
        %v486 = vpop.f32.mrf.mxu0
        %v487 = vadd.f32 0.0, %v486
        %v488 = vpop.f32.mrf.mxu0
        %v489 = vadd.f32 0.0, %v488
        %v490 = vpop.f32.mrf.mxu0
        %v491 = vadd.f32 0.0, %v490
        %v492 = vpop.f32.mrf.mxu0
        %v493 = vadd.f32 0.0, %v492
        %494 = vdwg.mxu0
        %495 = vmatprep.subr.bf16.mxu0 0
        %496 = vmatpush1.bf16.msra.mxu0 %v357
        %497 = vmatprep.subr.bf16.mxu0 0
        %498 = vmatpush1.bf16.msra.mxu0 %v354
        %499 = vmatprep.subr.bf16.mxu0 0
        %500 = vmatpush1.bf16.msra.mxu0 %v351
        %501 = vmatprep.subr.bf16.mxu0 0
        %502 = vmatpush1.bf16.msra.mxu0 %v348
        %503 = vmatprep.subr.bf16.mxu0 0
        %504 = vmatpush1.bf16.msra.mxu0 %v345
        %505 = vmatprep.subr.bf16.mxu0 0
        %506 = vmatpush1.bf16.msra.mxu0 %v342
        %507 = vmatprep.subr.bf16.mxu0 0
        %508 = vmatpush1.bf16.msra.mxu0 %v339
        %509 = vmatprep.subr.bf16.mxu0 0
        %510 = vmatpush1.bf16.msra.mxu0 %v336
        %511 = vmatprep.subr.bf16.mxu0 0
        %512 = vmatpush2.bf16.msra.mxu0 0
        %513 = vmatprep.subr.bf16.mxu0 0
        %514 = vmatpush2.bf16.msra.mxu0 0
        %515 = vmatprep.subr.bf16.mxu0 0
        %516 = vmatpush2.bf16.msra.mxu0 0
        %517 = vmatprep.subr.bf16.mxu0 0
        %518 = vmatpush2.bf16.msra.mxu0 0
        %519 = vmatprep.subr.bf16.mxu0 0
        %520 = vmatpush2.bf16.msra.mxu0 0
        %521 = vmatprep.subr.bf16.mxu0 0
        %522 = vmatpush2.bf16.msra.mxu0 0
        %523 = vmatprep.subr.bf16.mxu0 0
        %524 = vmatpush2.bf16.msra.mxu0 0
        %525 = vmatprep.subr.bf16.mxu0 0
        %526 = vmatpush2.bf16.msra.mxu0 0
        %527 = vmatprep.mubr.bf16.mxu0 0
        %528 = vmatmul.mubr.bf16.gmra.mxu0 %v214
        %v529 = vpop.f32.mrf.mxu0
        %v530 = vadd.f32 0.0, %v529
        %v531 = vpop.f32.mrf.mxu0
        %v532 = vpop.f32.mrf.mxu0
        %v533 = vadd.f32 0.0, %v532
        %v534 = vpop.f32.mrf.mxu0
        %535 = vmatprep.mubr.bf16.mxu0 0
        %536 = vmatmul.mubr.bf16.gmra.mxu0 %v215
        %v537 = vpop.f32.mrf.mxu0
        %v538 = vadd.f32 0.0, %v537
        %v539 = vpop.f32.mrf.mxu0
        %v540 = vpop.f32.mrf.mxu0
        %v541 = vadd.f32 0.0, %v540
        %v542 = vpop.f32.mrf.mxu0
        %543 = vmatprep.mubr.bf16.mxu0 0
        %544 = vmatmul.mubr.bf16.gmra.mxu0 %v216
        %v545 = vpop.f32.mrf.mxu0
        %v546 = vadd.f32 0.0, %v545
        %v547 = vpop.f32.mrf.mxu0
        %v548 = vpop.f32.mrf.mxu0
        %v549 = vadd.f32 0.0, %v548
        %v550 = vpop.f32.mrf.mxu0
        %551 = vmatprep.mubr.bf16.mxu0 0
        %552 = vmatmul.mubr.bf16.gmra.mxu0 %v217
        %v553 = vpop.f32.mrf.mxu0
        %v554 = vadd.f32 0.0, %v553
        %v555 = vpop.f32.mrf.mxu0
        %v556 = vpop.f32.mrf.mxu0
        %v557 = vadd.f32 0.0, %v556
        %v558 = vpop.f32.mrf.mxu0
        %559 = vmatprep.mubr.bf16.mxu0 0
        %560 = vmatmul.mubr.bf16.gmra.mxu0 %v218
        %v561 = vpop.f32.mrf.mxu0
        %v562 = vadd.f32 0.0, %v561
        %v563 = vpop.f32.mrf.mxu0
        %v564 = vpop.f32.mrf.mxu0
        %v565 = vadd.f32 0.0, %v564
        %v566 = vpop.f32.mrf.mxu0
        %567 = vmatprep.mubr.bf16.mxu0 0
        %568 = vmatmul.mubr.bf16.gmra.mxu0 %v219
        %v569 = vpop.f32.mrf.mxu0
        %v570 = vadd.f32 0.0, %v569
        %v571 = vpop.f32.mrf.mxu0
        %v572 = vpop.f32.mrf.mxu0
        %v573 = vadd.f32 0.0, %v572
        %v574 = vpop.f32.mrf.mxu0
        %575 = vmatprep.mubr.bf16.mxu0 0
        %576 = vmatmul.mubr.bf16.gmra.mxu0 %v220
        %v577 = vpop.f32.mrf.mxu0
        %v578 = vadd.f32 0.0, %v577
        %v579 = vpop.f32.mrf.mxu0
        %v580 = vpop.f32.mrf.mxu0
        %v581 = vadd.f32 0.0, %v580
        %v582 = vpop.f32.mrf.mxu0
        %583 = vmatprep.mubr.bf16.mxu0 0
        %584 = vmatmul.mubr.bf16.gmra.mxu0 %v221
        %v585 = vpop.f32.mrf.mxu0
        %v586 = vadd.f32 0.0, %v585
        %v587 = vpop.f32.mrf.mxu0
        %v588 = vpop.f32.mrf.mxu0
        %v589 = vadd.f32 0.0, %v588
        %v590 = vpop.f32.mrf.mxu0
        %591 = vdwg.mxu0
        %v592 = vpack.c.bf16 %v421, %v417
        %v593 = vpack.c.bf16 %v423, %v419
        %v594 = vpack.c.bf16 %v533, %v530
        %v595 = vpack.c.bf16 %v431, %v427
        %v596 = vpack.c.bf16 %v433, %v429
        %v597 = vpack.c.bf16 %v541, %v538
        %v598 = vpack.c.bf16 %v441, %v437
        %v599 = vpack.c.bf16 %v443, %v439
        %v600 = vpack.c.bf16 %v549, %v546
        %v601 = vpack.c.bf16 %v451, %v447
        %v602 = vpack.c.bf16 %v453, %v449
        %v603 = vpack.c.bf16 %v557, %v554
        %v604 = vpack.c.bf16 %v461, %v457
        %v605 = vpack.c.bf16 %v463, %v459
        %v606 = vpack.c.bf16 %v565, %v562
        %v607 = vpack.c.bf16 %v471, %v467
        %v608 = vpack.c.bf16 %v473, %v469
        %v609 = vpack.c.bf16 %v573, %v570
        %v610 = vpack.c.bf16 %v481, %v477
        %v611 = vpack.c.bf16 %v483, %v479
        %v612 = vpack.c.bf16 %v581, %v578
        %v613 = vpack.c.bf16 %v491, %v487
        %v614 = vpack.c.bf16 %v493, %v489
        %v615 = vpack.c.bf16 %v589, %v586
        %v640 = vunpack.c.l.b16 %v592
        %v641 = vunpack.c.l.b16 %v593
        %v642 = vunpack.c.l.b16 %v594
        %v643 = vunpack.c.h.b16 %v592
        %v644 = vunpack.c.h.b16 %v593
        %v645 = vunpack.c.h.b16 %v594
        %v646 = vunpack.c.l.b16 %v595
        %v647 = vunpack.c.l.b16 %v596
        %v648 = vunpack.c.l.b16 %v597
        %v649 = vunpack.c.h.b16 %v595
        %v650 = vunpack.c.h.b16 %v596
        %v651 = vunpack.c.h.b16 %v597
        %v652 = vunpack.c.l.b16 %v598
        %v653 = vunpack.c.l.b16 %v599
        %v654 = vunpack.c.l.b16 %v600
        %v655 = vunpack.c.h.b16 %v598
        %v656 = vunpack.c.h.b16 %v599
        %v657 = vunpack.c.h.b16 %v600
        %v658 = vunpack.c.l.b16 %v601
        %v659 = vunpack.c.l.b16 %v602
        %v660 = vunpack.c.l.b16 %v603
        %v661 = vunpack.c.h.b16 %v601
        %v662 = vunpack.c.h.b16 %v602
        %v663 = vunpack.c.h.b16 %v603
        %v664 = vunpack.c.l.b16 %v604
        %v665 = vunpack.c.l.b16 %v605
        %v666 = vunpack.c.l.b16 %v606
        %v667 = vunpack.c.h.b16 %v604
        %v668 = vunpack.c.h.b16 %v605
        %v669 = vunpack.c.h.b16 %v606
        %v670 = vunpack.c.l.b16 %v607
        %v671 = vunpack.c.l.b16 %v608
        %v672 = vunpack.c.l.b16 %v609
        %v673 = vunpack.c.h.b16 %v607
        %v674 = vunpack.c.h.b16 %v608
        %v675 = vunpack.c.h.b16 %v609
        %v676 = vunpack.c.l.b16 %v610
        %v677 = vunpack.c.l.b16 %v611
        %v678 = vunpack.c.l.b16 %v612
        %v679 = vunpack.c.h.b16 %v610
        %v680 = vunpack.c.h.b16 %v611
        %v681 = vunpack.c.h.b16 %v612
        %v682 = vunpack.c.l.b16 %v613
        %v683 = vunpack.c.l.b16 %v614
        %v684 = vunpack.c.l.b16 %v615
        %v685 = vunpack.c.h.b16 %v613
        %v686 = vunpack.c.h.b16 %v614
        %v687 = vunpack.c.h.b16 %v615
        %v688 = vpack.c.b16 %v641, %v640
        %v689 = vpack.c.b16 %v642, %v642
        %v690 = vpack.c.b16 %v644, %v643
        %v691 = vpack.c.b16 %v645, %v645
        %v692 = vpack.c.b16 %v647, %v646
        %v693 = vpack.c.b16 %v648, %v648
        %v694 = vpack.c.b16 %v650, %v649
        %v695 = vpack.c.b16 %v651, %v651
        %v696 = vpack.c.b16 %v653, %v652
        %v697 = vpack.c.b16 %v654, %v654
        %v698 = vpack.c.b16 %v656, %v655
        %v699 = vpack.c.b16 %v657, %v657
        %v700 = vpack.c.b16 %v659, %v658
        %v701 = vpack.c.b16 %v660, %v660
        %v702 = vpack.c.b16 %v662, %v661
        %v703 = vpack.c.b16 %v663, %v663
        %v704 = vpack.c.b16 %v665, %v664
        %v705 = vpack.c.b16 %v666, %v666
        %v706 = vpack.c.b16 %v668, %v667
        %v707 = vpack.c.b16 %v669, %v669
        %v708 = vpack.c.b16 %v671, %v670
        %v709 = vpack.c.b16 %v672, %v672
        %v710 = vpack.c.b16 %v674, %v673
        %v711 = vpack.c.b16 %v675, %v675
        %v712 = vpack.c.b16 %v677, %v676
        %v713 = vpack.c.b16 %v678, %v678
        %v714 = vpack.c.b16 %v680, %v679
        %v715 = vpack.c.b16 %v681, %v681
        %v716 = vpack.c.b16 %v683, %v682
        %v717 = vpack.c.b16 %v684, %v684
        %v718 = vpack.c.b16 %v686, %v685
        %v719 = vpack.c.b16 %v687, %v687
        %752 = vst [vmem:[%s194] sm:$0xff] %v688
        %753 = vst [vmem:[%s194 + $0x8] sm:$0xf] %v689
        %754 = vst [vmem:[%s194 + $0xc] sm:$0xff] %v690
        %755 = vst [vmem:[%s194 + $0x14] sm:$0xf] %v691
        %756 = vst [vmem:[%s194 + $0x18] sm:$0xff] %v692
        %757 = vst [vmem:[%s194 + $0x20] sm:$0xf] %v693
        %758 = vst [vmem:[%s194 + $0x24] sm:$0xff] %v694
        %759 = vst [vmem:[%s194 + $0x2c] sm:$0xf] %v695
        %760 = vst [vmem:[%s194 + $0x30] sm:$0xff] %v696
        %761 = vst [vmem:[%s194 + $0x38] sm:$0xf] %v697
        %762 = vst [vmem:[%s194 + $0x3c] sm:$0xff] %v698
        %763 = vst [vmem:[%s194 + $0x44] sm:$0xf] %v699
        %764 = vst [vmem:[%s194 + $0x48] sm:$0xff] %v700
        %765 = vst [vmem:[%s194 + $0x50] sm:$0xf] %v701
        %766 = vst [vmem:[%s194 + $0x54] sm:$0xff] %v702
        %767 = vst [vmem:[%s194 + $0x5c] sm:$0xf] %v703
        %768 = vst [vmem:[%s194 + $0x60] sm:$0xff] %v704
        %769 = vst [vmem:[%s194 + $0x68] sm:$0xf] %v705
        %770 = vst [vmem:[%s194 + $0x6c] sm:$0xff] %v706
        %771 = vst [vmem:[%s194 + $0x74] sm:$0xf] %v707
        %772 = vst [vmem:[%s194 + $0x78] sm:$0xff] %v708
        %773 = vst [vmem:[%s194 + $0x80] sm:$0xf] %v709
        %774 = vst [vmem:[%s194 + $0x84] sm:$0xff] %v710
        %775 = vst [vmem:[%s194 + $0x8c] sm:$0xf] %v711
        %776 = vst [vmem:[%s194 + $0x90] sm:$0xff] %v712
        %777 = vst [vmem:[%s194 + $0x98] sm:$0xf] %v713
        %778 = vst [vmem:[%s194 + $0x9c] sm:$0xff] %v714
        %779 = vst [vmem:[%s194 + $0xa4] sm:$0xf] %v715
        %780 = vst [vmem:[%s194 + $0xa8] sm:$0xff] %v716
        %781 = vst [vmem:[%s194 + $0xb0] sm:$0xf] %v717
        %782 = vst [vmem:[%s194 + $0xb4] sm:$0xff] %v718
        %783 = vst [vmem:[%s194 + $0xbc] sm:$0xf] %v719
        %s784 = sand.u32 %s91, 1
        %s785 = scalar_lea.sflag [#allocation4], %s784
        %s786 = sand.u32 %s91, 1
        %s787 = smul.addr %s786, 192
        %s788 = scalar_lea.vmem [#allocation7], %s787
        // Predicated region
        $region37: #{tpu_custom_call.1} parent=27 // pred_check
          %p789 = pneg %p101
        $region38: #{tpu_custom_call.1} parent=27 // pred_check_branch
          %791 = sbr.rel (%p789) target = $region40
        $region39: #{tpu_custom_call.1} parent=27 // pred_region
          %s792 = smul.u32 16, %s25
          %s794 = ssub.s32 3072, 3072
          %795 = vsyncadd %s785, %s794
          %s796 = smul.addr %s792, 3
          %s797 = smul.addr %s24, 96
          %s798 = sadd.s32 %s796, %s797
          %s799 = smul.addr %s798, 64
          %s800 = scalar_lea.hbm %s2, %s799
          %s801 = sshll.u32 %s788, 4
          %s802 = int_to_ptr.vmem [resolvable:$true] %s801
          %807 = dma.vmem_to_hbm [thread:$0]  %s802, 3072, %s800, %s785, 192, 192, 12
        $region40: #{tpu_custom_call.1} parent=27 // pred_fallthru
          _
      $region28: #{tpu_custom_call.1} parent=5 // pred_fallthru
        _
      %p808 = scmp.le.s32.totalorder 2, %s15
      // Predicated region
      $region41: #{tpu_custom_call.1} parent=5 // pred_check
        %p809 = pneg %p808
      $region42: #{tpu_custom_call.1} parent=5 // pred_check_branch
        %811 = sbr.rel (%p809) target = $region44
      $region43: #{tpu_custom_call.1} parent=5 // pred_region
        %s812 = ssub.s32 %s15, 2
        // Predicated region
        $region45: #{tpu_custom_call.1} parent=43 // pred_check
          %p813 = pneg %p107
        $region46: #{tpu_custom_call.1} parent=43 // pred_check_branch
          %815 = sbr.rel (%p813) target = $region48
        $region47: #{tpu_custom_call.1} parent=43 // pred_region
          %s816 = sand.u32 %s92, 1
          %s817 = scalar_lea.sflag [#allocation4], %s816
          %s818 = sand.u32 %s92, 1
          %s819 = smul.addr %s818, 192
          %s820 = scalar_lea.vmem [#allocation7], %s819
          %821 = dma.done %s817, 3072
        $region48: #{tpu_custom_call.1} parent=43 // pred_fallthru
          _
      $region44: #{tpu_custom_call.1} parent=5 // pred_fallthru
        _
    $region6: #{tpu_custom_call.1} parent=1 // loop_footer
      %s19 = sadd.s32 1, %s15
    $region7: #{tpu_custom_call.1} parent=1 // loop_footer_branch
      %14 = sbr.rel target = $region3
    $region8: #{tpu_custom_call.1} parent=1 // loop_exit
      _
    %822 = vsyncpa [#allocation3], 1
    %s823 = scalar_lea.sflag [#allocation3], 1
    %824 = vsyncpa %s823, 1
    %825 = vsyncpa [#allocation6], 1
    %826 = vsyncpa [#allocation4], 1
    %s827 = scalar_lea.sflag [#allocation4], 1
    %828 = vsyncpa %s827, 1

// kernel: tpu_custom_call.1
$region0: #{tpu_custom_call.1}
  #allocation0 [shape = 'u32[]', space=smem, size = 0x4, offset = 0x4, fixed_abs, tag = 'smem constant byte address 0x4 - core index']
  #allocation1 [shape = 'u32[144,128]{1,0:T(1,128)}', space=vmem, size = 0x12000, scoped, tag = 'internal scratch']
  %s0 = inlined_call_operand.hbm [shape: f32[2,256,128], index: 0, kind: input, shape index: {}]
  %s1 = inlined_call_operand.hbm [shape: bf16[128,384], index: 1, kind: input, shape index: {}]
  %s2 = inlined_call_operand.hbm [shape: bf16[2,256,384], index: 2, kind: output, shape index: {}]
  %s3 = sld [smem:[#allocation0]]
  $region49: #{tpu_custom_call.1} parent=0
    _
  %s5 = ssub.s32 1, %s3
  %s6 = scalar_select 0, %s5, %s3
  $region1: #{tpu_custom_call.1} parent=0
    #allocation2 [shape = 'u8[131072]{0}', space=vmem, size = 0x20000, scoped, tag = 'input window, operand 0']
    #allocation3 [shape = 's32[2]{0}', space=sflag, size = 0x8, scoped, tag = 'scoped memory for tpu_custom_call.1']
    #allocation4 [shape = 's32[2]{0}', space=sflag, size = 0x8, scoped, tag = 'scoped memory for tpu_custom_call.1']
    #allocation5 [shape = 'u8[98304]{0}', space=vmem, size = 0x18000, scoped, tag = 'input window, operand 1, single buffered']
    #allocation6 [shape = 's32[1]{0}', space=sflag, size = 0x4, scoped, tag = 'scoped memory for tpu_custom_call.1']
    #allocation7 [shape = 'u8[196608]{0}', space=vmem, size = 0x30000, scoped, tag = 'output window, operand 0']
    %7 = vsyncpa [#allocation3], 0
    %s8 = scalar_lea.sflag [#allocation3], 1
    %9 = vsyncpa %s8, 0
    %10 = vsyncpa [#allocation6], 0
    %11 = vsyncpa [#allocation4], 0
    %s12 = scalar_lea.sflag [#allocation4], 1
    %13 = vsyncpa %s12, 0
    loop: start=0, step=1, limit=6
    $region2: #{tpu_custom_call.1} parent=1 // loop_pre_header
      _
    $region3: #{tpu_custom_call.1} parent=1 // loop_header
      %s15 = sphi 0, %s19
      %p16 = scmp.ge.s32.totalorder %s15, 6
      %s22 = sphi 0, %s34
      %s23 = sphi 0, %s30
      %s24 = sphi 0, %s22
      %s25 = sphi 0, %s23
      %s26 = sphi 0, %s24
      %s27 = sphi 0, %s25
      %s39 = sphi 0, %s41
      %s42 = sphi 0, %s39
      %s43 = sphi 0, %s42
      %s59 = sphi 0, %s43
      %s63 = sphi 0, %s63
      %s65 = sphi 0, %s63
      %s66 = sphi 0, %s65
      %s80 = sphi 0, %s66
      %s88 = sphi 0, %s90
      %s91 = sphi 0, %s88
      %s92 = sphi 0, %s91
      %s108 = sphi 0, %s92
    $region4: #{tpu_custom_call.1} parent=1 // loop_header_branch
      %18 = sbr.rel (%p16) target = $region8
    $region5: #{tpu_custom_call.1} parent=1 // loop_body
      %s20 = ssub.s32 %s15, 1
      %s21 = ssub.s32 %s15, 2
      %s28 = sadd.s32 1, %s23
      %p29 = scmp.ge.s32.totalorder %s28, 2
      %s30 = scalar_select %p29, 0, %s28
      %s31 = sadd.s32 1, %s22
      %s32 = scalar_select %p29, %s31, %s22
      %p33 = scmp.ge.s32.totalorder %s32, 2
      %s34 = scalar_select %p33, 0, %s32
      %s35 = ssub.s32 %s22, %s34
      %s36 = ssub.s32 %s23, %s30
      %s37 = sor.u32 %s35, %s36
      %p38 = scmp.eq.s32.totalorder %s37, 0
      %s40 = sadd.s32 %s39, 1
      %s41 = scalar_select %p38, %s39, %s40
      %p44 = pneg %p38
      %p45 = scmp.eq.s32.totalorder %s15, 3
      %p46 = por %p44, %p45
      %p47 = scmp.ne.s32.totalorder %s39, %s42
      %p48 = scmp.eq.s32.totalorder %s15, 0
      %p49 = por %p47, %p48
      %p50 = scmp.ne.s32.totalorder %s39, %s42
      %p51 = scmp.eq.s32.totalorder %s20, 3
      %p52 = por %p50, %p51
      %p53 = scmp.ne.s32.totalorder %s42, %s43
      %p54 = scmp.eq.s32.totalorder %s20, 0
      %p55 = por %p53, %p54
      %p56 = scmp.ne.s32.totalorder %s42, %s43
      %p57 = scmp.eq.s32.totalorder %s21, 3
      %p58 = por %p56, %p57
      %p60 = scmp.ne.s32.totalorder %s43, %s59
      %p61 = scmp.eq.s32.totalorder %s21, 0
      %p62 = por %p60, %p61
      %s64 = sadd.s32 %s63, 1
      %p67 = scmp.eq.s32.totalorder %s15, 3
      %p68 = scmp.ne.s32.totalorder %s63, %s65
      %p69 = scmp.eq.s32.totalorder %s15, 0
      %p70 = por %p68, %p69
      %p71 = scmp.ne.s32.totalorder %s63, %s65
      %p72 = scmp.eq.s32.totalorder %s20, 3
      %p73 = por %p71, %p72
      %p74 = scmp.ne.s32.totalorder %s65, %s66
      %p75 = scmp.eq.s32.totalorder %s20, 0
      %p76 = por %p74, %p75
      %p77 = scmp.ne.s32.totalorder %s65, %s66
      %p78 = scmp.eq.s32.totalorder %s21, 3
      %p79 = por %p77, %p78
      %p81 = scmp.ne.s32.totalorder %s66, %s80
      %p82 = scmp.eq.s32.totalorder %s21, 0
      %p83 = por %p81, %p82
      %s84 = ssub.s32 %s22, %s34
      %s85 = ssub.s32 %s23, %s30
      %s86 = sor.u32 %s84, %s85
      %p87 = scmp.eq.s32.totalorder %s86, 0
      %s89 = sadd.s32 %s88, 1
      %s90 = scalar_select %p87, %s88, %s89
      %p93 = pneg %p87
      %p94 = scmp.eq.s32.totalorder %s15, 3
      %p95 = por %p93, %p94
      %p96 = scmp.ne.s32.totalorder %s88, %s91
      %p97 = scmp.eq.s32.totalorder %s15, 0
      %p98 = por %p96, %p97
      %p99 = scmp.ne.s32.totalorder %s88, %s91
      %p100 = scmp.eq.s32.totalorder %s20, 3
      %p101 = por %p99, %p100
      %p102 = scmp.ne.s32.totalorder %s91, %s92
      %p103 = scmp.eq.s32.totalorder %s20, 0
      %p104 = por %p102, %p103
      %p105 = scmp.ne.s32.totalorder %s91, %s92
      %p106 = scmp.eq.s32.totalorder %s21, 3
      %p107 = por %p105, %p106
      %p109 = scmp.ne.s32.totalorder %s92, %s108
      %p110 = scmp.eq.s32.totalorder %s21, 0
      %p111 = por %p109, %p110
      %p112 = scmp.le.s32.totalorder 1, %s15
      %p113 = scmp.lt.s32.totalorder %s15, 5
      %p114 = pnand %p112, %p113
      %p115 = pneg %p114
      // Predicated region
      $region9: #{tpu_custom_call.1} parent=5 // pred_check
        _
      $region10: #{tpu_custom_call.1} parent=5 // pred_check_branch
        %117 = sbr.rel (%p114) target = $region12
      $region11: #{tpu_custom_call.1} parent=5 // pred_region
        %s118 = ssub.s32 %s15, 1
        // Predicated region
        $region13: #{tpu_custom_call.1} parent=11 // pred_check
          %p119 = pneg %p76
        $region14: #{tpu_custom_call.1} parent=11 // pred_check_branch
          %121 = sbr.rel (%p119) target = $region16
        $region15: #{tpu_custom_call.1} parent=11 // pred_region
          %s123 = ssub.s32 3072, 3072
          %124 = vsyncadd [#allocation6], %s123
          %s125 = sshll.u32 [#allocation5], 4
          %s126 = int_to_ptr.vmem [resolvable:$true] %s125
          %131 = dma.hbm_to_vmem [thread:$0]  %s1, 3072, %s126, [#allocation6], 192, 192, 12
        $region16: #{tpu_custom_call.1} parent=11 // pred_fallthru
          _
      $region12: #{tpu_custom_call.1} parent=5 // pred_fallthru
        _
      %p132 = scmp.lt.s32.totalorder %s15, 4
      // Predicated region
      $region17: #{tpu_custom_call.1} parent=5 // pred_check
        %p133 = pneg %p132
      $region18: #{tpu_custom_call.1} parent=5 // pred_check_branch
        %135 = sbr.rel (%p133) target = $region20
      $region19: #{tpu_custom_call.1} parent=5 // pred_region
        // Predicated region
        $region21: #{tpu_custom_call.1} parent=19 // pred_check
          %p136 = pneg %p49
        $region22: #{tpu_custom_call.1} parent=19 // pred_check_branch
          %138 = sbr.rel (%p136) target = $region24
        $region23: #{tpu_custom_call.1} parent=19 // pred_region
          %s139 = sand.u32 %s39, 1
          %s140 = scalar_lea.sflag [#allocation3], %s139
          %s141 = sand.u32 %s39, 1
          %s142 = smul.addr %s141, 128
          %s143 = scalar_lea.vmem [#allocation2], %s142
          %s144 = smul.u32 16, %s23
          %s146 = ssub.s32 2048, 2048
          %147 = vsyncadd %s140, %s146
          %s148 = smul.addr %s22, 32
          %s149 = sadd.s32 %s144, %s148
          %s150 = smul.addr %s149, 128
          %s151 = scalar_lea.hbm %s0, %s150
          %s152 = sshll.u32 %s143, 4
          %s153 = int_to_ptr.vmem [resolvable:$true] %s152
          %158 = dma.hbm_to_vmem [thread:$0]  %s151, 2048, %s153, %s140, 128, 128, 8
        $region24: #{tpu_custom_call.1} parent=19 // pred_fallthru
          _
      $region20: #{tpu_custom_call.1} parent=5 // pred_fallthru
        _
      %p159 = scmp.le.s32.totalorder 1, %s15
      %p160 = scmp.lt.s32.totalorder %s15, 5
      %p161 = pnand %p159, %p160
      %p162 = pneg %p161
      // Predicated region
      $region25: #{tpu_custom_call.1} parent=5 // pred_check
        _
      $region26: #{tpu_custom_call.1} parent=5 // pred_check_branch
        %164 = sbr.rel (%p161) target = $region28
      $region27: #{tpu_custom_call.1} parent=5 // pred_region
        %s165 = ssub.s32 %s15, 1
        %s166 = sand.u32 %s42, 1
        %s167 = scalar_lea.sflag [#allocation3], %s166
        %s168 = sand.u32 %s42, 1
        %s169 = smul.addr %s168, 128
        %s170 = scalar_lea.vmem [#allocation2], %s169
        // Predicated region
        $region29: #{tpu_custom_call.1} parent=27 // pred_check
          %p171 = pneg %p55
        $region30: #{tpu_custom_call.1} parent=27 // pred_check_branch
          %173 = sbr.rel (%p171) target = $region32
        $region31: #{tpu_custom_call.1} parent=27 // pred_region
          %174 = dma.done %s167, 2048
        $region32: #{tpu_custom_call.1} parent=27 // pred_fallthru
          _
        // Predicated region
        $region33: #{tpu_custom_call.1} parent=27 // pred_check
          %p175 = pneg %p76
        $region34: #{tpu_custom_call.1} parent=27 // pred_check_branch
          %177 = sbr.rel (%p175) target = $region36
        $region35: #{tpu_custom_call.1} parent=27 // pred_region
          %178 = dma.done [#allocation6], 3072
        $region36: #{tpu_custom_call.1} parent=27 // pred_fallthru
          _
        %s179 = sand.u32 %s42, 1
        %s180 = scalar_lea.sflag [#allocation3], %s179
        %s181 = sand.u32 %s42, 1
        %s182 = smul.addr %s181, 128
        %s183 = scalar_lea.vmem [#allocation2], %s182
        %p184 = pneg %p55
        %p185 = pneg %p52
        %p186 = pneg %p76
        %p187 = pneg %p73
        %p188 = pneg %p104
        %p189 = pneg %p101
        %s190 = sand.u32 %s91, 1
        %s191 = scalar_lea.sflag [#allocation4], %s190
        %s192 = sand.u32 %s91, 1
        %s193 = smul.addr %s192, 192
        %s194 = scalar_lea.vmem [#allocation7], %s193
        %s195 = smul.u32 16, %s25
        %s196 = smul.u32 16, %s25
        %v198 = vld [vmem:[%s170] sm:$0xff]
        %v199 = vld [vmem:[%s170 + $0x8] sm:$0xff]
        %v200 = vld [vmem:[%s170 + $0x10] sm:$0xff]
        %v201 = vld [vmem:[%s170 + $0x18] sm:$0xff]
        %v202 = vld [vmem:[%s170 + $0x20] sm:$0xff]
        %v203 = vld [vmem:[%s170 + $0x28] sm:$0xff]
        %v204 = vld [vmem:[%s170 + $0x30] sm:$0xff]
        %v205 = vld [vmem:[%s170 + $0x38] sm:$0xff]
        %v206 = vld [vmem:[%s170 + $0x40] sm:$0xff]
        %v207 = vld [vmem:[%s170 + $0x48] sm:$0xff]
        %v208 = vld [vmem:[%s170 + $0x50] sm:$0xff]
        %v209 = vld [vmem:[%s170 + $0x58] sm:$0xff]
        %v210 = vld [vmem:[%s170 + $0x60] sm:$0xff]
        %v211 = vld [vmem:[%s170 + $0x68] sm:$0xff]
        %v212 = vld [vmem:[%s170 + $0x70] sm:$0xff]
        %v213 = vld [vmem:[%s170 + $0x78] sm:$0xff]
        %v214 = vpack.c.bf16 %v199, %v198
        %v215 = vpack.c.bf16 %v201, %v200
        %v216 = vpack.c.bf16 %v203, %v202
        %v217 = vpack.c.bf16 %v205, %v204
        %v218 = vpack.c.bf16 %v207, %v206
        %v219 = vpack.c.bf16 %v209, %v208
        %v220 = vpack.c.bf16 %v211, %v210
        %v221 = vpack.c.bf16 %v213, %v212
        %v222 = vld [vmem:[#allocation5] sm:$0xff]
        %v223 = vld [vmem:[#allocation5 + $0x8] sm:$0xf]
        %v224 = vld [vmem:[#allocation5 + $0xc] sm:$0xff]
        %v225 = vld [vmem:[#allocation5 + $0x14] sm:$0xf]
        %v226 = vld [vmem:[#allocation5 + $0x18] sm:$0xff]
        %v227 = vld [vmem:[#allocation5 + $0x20] sm:$0xf]
        %v228 = vld [vmem:[#allocation5 + $0x24] sm:$0xff]
        %v229 = vld [vmem:[#allocation5 + $0x2c] sm:$0xf]
        %v230 = vld [vmem:[#allocation5 + $0x30] sm:$0xff]
        %v231 = vld [vmem:[#allocation5 + $0x38] sm:$0xf]
        %v232 = vld [vmem:[#allocation5 + $0x3c] sm:$0xff]
        %v233 = vld [vmem:[#allocation5 + $0x44] sm:$0xf]
        %v234 = vld [vmem:[#allocation5 + $0x48] sm:$0xff]
        %v235 = vld [vmem:[#allocation5 + $0x50] sm:$0xf]
        %v236 = vld [vmem:[#allocation5 + $0x54] sm:$0xff]
        %v237 = vld [vmem:[#allocation5 + $0x5c] sm:$0xf]
        %v238 = vld [vmem:[#allocation5 + $0x60] sm:$0xff]
        %v239 = vld [vmem:[#allocation5 + $0x68] sm:$0xf]
        %v240 = vld [vmem:[#allocation5 + $0x6c] sm:$0xff]
        %v241 = vld [vmem:[#allocation5 + $0x74] sm:$0xf]
        %v242 = vld [vmem:[#allocation5 + $0x78] sm:$0xff]
        %v243 = vld [vmem:[#allocation5 + $0x80] sm:$0xf]
        %v244 = vld [vmem:[#allocation5 + $0x84] sm:$0xff]
        %v245 = vld [vmem:[#allocation5 + $0x8c] sm:$0xf]
        %v246 = vld [vmem:[#allocation5 + $0x90] sm:$0xff]
        %v247 = vld [vmem:[#allocation5 + $0x98] sm:$0xf]
        %v248 = vld [vmem:[#allocation5 + $0x9c] sm:$0xff]
        %v249 = vld [vmem:[#allocation5 + $0xa4] sm:$0xf]
        %v250 = vld [vmem:[#allocation5 + $0xa8] sm:$0xff]
        %v251 = vld [vmem:[#allocation5 + $0xb0] sm:$0xf]
        %v252 = vld [vmem:[#allocation5 + $0xb4] sm:$0xff]
        %v253 = vld [vmem:[#allocation5 + $0xbc] sm:$0xf]
        %v286 = vunpack.c.l.b16 %v222
        %v287 = vunpack.c.h.b16 %v222
        %v288 = vunpack.c.l.b16 %v223
        %v289 = vunpack.c.l.b16 %v224
        %v290 = vunpack.c.h.b16 %v224
        %v291 = vunpack.c.l.b16 %v225
        %v292 = vunpack.c.l.b16 %v226
        %v293 = vunpack.c.h.b16 %v226
        %v294 = vunpack.c.l.b16 %v227
        %v295 = vunpack.c.l.b16 %v228
        %v296 = vunpack.c.h.b16 %v228
        %v297 = vunpack.c.l.b16 %v229
        %v298 = vunpack.c.l.b16 %v230
        %v299 = vunpack.c.h.b16 %v230
        %v300 = vunpack.c.l.b16 %v231
        %v301 = vunpack.c.l.b16 %v232
        %v302 = vunpack.c.h.b16 %v232
        %v303 = vunpack.c.l.b16 %v233
        %v304 = vunpack.c.l.b16 %v234
        %v305 = vunpack.c.h.b16 %v234
        %v306 = vunpack.c.l.b16 %v235
        %v307 = vunpack.c.l.b16 %v236
        %v308 = vunpack.c.h.b16 %v236
        %v309 = vunpack.c.l.b16 %v237
        %v310 = vunpack.c.l.b16 %v238
        %v311 = vunpack.c.h.b16 %v238
        %v312 = vunpack.c.l.b16 %v239
        %v313 = vunpack.c.l.b16 %v240
        %v314 = vunpack.c.h.b16 %v240
        %v315 = vunpack.c.l.b16 %v241
        %v316 = vunpack.c.l.b16 %v242
        %v317 = vunpack.c.h.b16 %v242
        %v318 = vunpack.c.l.b16 %v243
        %v319 = vunpack.c.l.b16 %v244
        %v320 = vunpack.c.h.b16 %v244
        %v321 = vunpack.c.l.b16 %v245
        %v322 = vunpack.c.l.b16 %v246
        %v323 = vunpack.c.h.b16 %v246
        %v324 = vunpack.c.l.b16 %v247
        %v325 = vunpack.c.l.b16 %v248
        %v326 = vunpack.c.h.b16 %v248
        %v327 = vunpack.c.l.b16 %v249
        %v328 = vunpack.c.l.b16 %v250
        %v329 = vunpack.c.h.b16 %v250
        %v330 = vunpack.c.l.b16 %v251
        %v331 = vunpack.c.l.b16 %v252
        %v332 = vunpack.c.h.b16 %v252
        %v333 = vunpack.c.l.b16 %v253
        %v334 = vpack.c.b16 %v289, %v286
        %v335 = vpack.c.b16 %v290, %v287
        %v336 = vpack.c.b16 %v291, %v288
        %v337 = vpack.c.b16 %v295, %v292
        %v338 = vpack.c.b16 %v296, %v293
        %v339 = vpack.c.b16 %v297, %v294
        %v340 = vpack.c.b16 %v301, %v298
        %v341 = vpack.c.b16 %v302, %v299
        %v342 = vpack.c.b16 %v303, %v300
        %v343 = vpack.c.b16 %v307, %v304
        %v344 = vpack.c.b16 %v308, %v305
        %v345 = vpack.c.b16 %v309, %v306
        %v346 = vpack.c.b16 %v313, %v310
        %v347 = vpack.c.b16 %v314, %v311
        %v348 = vpack.c.b16 %v315, %v312
        %v349 = vpack.c.b16 %v319, %v316
        %v350 = vpack.c.b16 %v320, %v317
        %v351 = vpack.c.b16 %v321, %v318
        %v352 = vpack.c.b16 %v325, %v322
        %v353 = vpack.c.b16 %v326, %v323
        %v354 = vpack.c.b16 %v327, %v324
        %v355 = vpack.c.b16 %v331, %v328
        %v356 = vpack.c.b16 %v332, %v329
        %v357 = vpack.c.b16 %v333, %v330
        %382 = vmatprep.subr.bf16.mxu0 %v356
        %383 = vmatpush1.bf16.msra.mxu0 %v355
        %384 = vmatprep.subr.bf16.mxu0 %v353
        %385 = vmatpush1.bf16.msra.mxu0 %v352
        %386 = vmatprep.subr.bf16.mxu0 %v350
        %387 = vmatpush1.bf16.msra.mxu0 %v349
        %388 = vmatprep.subr.bf16.mxu0 %v347
        %389 = vmatpush1.bf16.msra.mxu0 %v346
        %390 = vmatprep.subr.bf16.mxu0 %v344
        %391 = vmatpush1.bf16.msra.mxu0 %v343
        %392 = vmatprep.subr.bf16.mxu0 %v341
        %393 = vmatpush1.bf16.msra.mxu0 %v340
        %394 = vmatprep.subr.bf16.mxu0 %v338
        %395 = vmatpush1.bf16.msra.mxu0 %v337
        %396 = vmatprep.subr.bf16.mxu0 %v335
        %397 = vmatpush1.bf16.msra.mxu0 %v334
        %398 = vmatprep.subr.bf16.mxu0 0
        %399 = vmatpush2.bf16.msra.mxu0 0
        %400 = vmatprep.subr.bf16.mxu0 0
        %401 = vmatpush2.bf16.msra.mxu0 0
        %402 = vmatprep.subr.bf16.mxu0 0
        %403 = vmatpush2.bf16.msra.mxu0 0
        %404 = vmatprep.subr.bf16.mxu0 0
        %405 = vmatpush2.bf16.msra.mxu0 0
        %406 = vmatprep.subr.bf16.mxu0 0
        %407 = vmatpush2.bf16.msra.mxu0 0
        %408 = vmatprep.subr.bf16.mxu0 0
        %409 = vmatpush2.bf16.msra.mxu0 0
        %410 = vmatprep.subr.bf16.mxu0 0
        %411 = vmatpush2.bf16.msra.mxu0 0
        %412 = vmatprep.subr.bf16.mxu0 0
        %413 = vmatpush2.bf16.msra.mxu0 0
        %414 = vmatprep.mubr.bf16.mxu0 0
        %415 = vmatmul.mubr.bf16.gmra.mxu0 %v214
        %v416 = vpop.f32.mrf.mxu0
        %v417 = vadd.f32 0.0, %v416
        %v418 = vpop.f32.mrf.mxu0
        %v419 = vadd.f32 0.0, %v418
        %v420 = vpop.f32.mrf.mxu0
        %v421 = vadd.f32 0.0, %v420
        %v422 = vpop.f32.mrf.mxu0
        %v423 = vadd.f32 0.0, %v422
        %424 = vmatprep.mubr.bf16.mxu0 0
        %425 = vmatmul.mubr.bf16.gmra.mxu0 %v215
        %v426 = vpop.f32.mrf.mxu0
        %v427 = vadd.f32 0.0, %v426
        %v428 = vpop.f32.mrf.mxu0
        %v429 = vadd.f32 0.0, %v428
        %v430 = vpop.f32.mrf.mxu0
        %v431 = vadd.f32 0.0, %v430
        %v432 = vpop.f32.mrf.mxu0
        %v433 = vadd.f32 0.0, %v432
        %434 = vmatprep.mubr.bf16.mxu0 0
        %435 = vmatmul.mubr.bf16.gmra.mxu0 %v216
        %v436 = vpop.f32.mrf.mxu0
        %v437 = vadd.f32 0.0, %v436
        %v438 = vpop.f32.mrf.mxu0
        %v439 = vadd.f32 0.0, %v438
        %v440 = vpop.f32.mrf.mxu0
        %v441 = vadd.f32 0.0, %v440
        %v442 = vpop.f32.mrf.mxu0
        %v443 = vadd.f32 0.0, %v442
        %444 = vmatprep.mubr.bf16.mxu0 0
        %445 = vmatmul.mubr.bf16.gmra.mxu0 %v217
        %v446 = vpop.f32.mrf.mxu0
        %v447 = vadd.f32 0.0, %v446
        %v448 = vpop.f32.mrf.mxu0
        %v449 = vadd.f32 0.0, %v448
        %v450 = vpop.f32.mrf.mxu0
        %v451 = vadd.f32 0.0, %v450
        %v452 = vpop.f32.mrf.mxu0
        %v453 = vadd.f32 0.0, %v452
        %454 = vmatprep.mubr.bf16.mxu0 0
        %455 = vmatmul.mubr.bf16.gmra.mxu0 %v218
        %v456 = vpop.f32.mrf.mxu0
        %v457 = vadd.f32 0.0, %v456
        %v458 = vpop.f32.mrf.mxu0
        %v459 = vadd.f32 0.0, %v458
        %v460 = vpop.f32.mrf.mxu0
        %v461 = vadd.f32 0.0, %v460
        %v462 = vpop.f32.mrf.mxu0
        %v463 = vadd.f32 0.0, %v462
        %464 = vmatprep.mubr.bf16.mxu0 0
        %465 = vmatmul.mubr.bf16.gmra.mxu0 %v219
        %v466 = vpop.f32.mrf.mxu0
        %v467 = vadd.f32 0.0, %v466
        %v468 = vpop.f32.mrf.mxu0
        %v469 = vadd.f32 0.0, %v468
        %v470 = vpop.f32.mrf.mxu0
        %v471 = vadd.f32 0.0, %v470
        %v472 = vpop.f32.mrf.mxu0
        %v473 = vadd.f32 0.0, %v472
        %474 = vmatprep.mubr.bf16.mxu0 0
        %475 = vmatmul.mubr.bf16.gmra.mxu0 %v220
        %v476 = vpop.f32.mrf.mxu0
        %v477 = vadd.f32 0.0, %v476
        %v478 = vpop.f32.mrf.mxu0
        %v479 = vadd.f32 0.0, %v478
        %v480 = vpop.f32.mrf.mxu0
        %v481 = vadd.f32 0.0, %v480
        %v482 = vpop.f32.mrf.mxu0
        %v483 = vadd.f32 0.0, %v482
        %484 = vmatprep.mubr.bf16.mxu0 0
        %485 = vmatmul.mubr.bf16.gmra.mxu0 %v221
        %v486 = vpop.f32.mrf.mxu0
        %v487 = vadd.f32 0.0, %v486
        %v488 = vpop.f32.mrf.mxu0
        %v489 = vadd.f32 0.0, %v488
        %v490 = vpop.f32.mrf.mxu0
        %v491 = vadd.f32 0.0, %v490
        %v492 = vpop.f32.mrf.mxu0
        %v493 = vadd.f32 0.0, %v492
        %494 = vdwg.mxu0
        %495 = vmatprep.subr.bf16.mxu0 0
        %496 = vmatpush1.bf16.msra.mxu0 %v357
        %497 = vmatprep.subr.bf16.mxu0 0
        %498 = vmatpush1.bf16.msra.mxu0 %v354
        %499 = vmatprep.subr.bf16.mxu0 0
        %500 = vmatpush1.bf16.msra.mxu0 %v351
        %501 = vmatprep.subr.bf16.mxu0 0
        %502 = vmatpush1.bf16.msra.mxu0 %v348
        %503 = vmatprep.subr.bf16.mxu0 0
        %504 = vmatpush1.bf16.msra.mxu0 %v345
        %505 = vmatprep.subr.bf16.mxu0 0
        %506 = vmatpush1.bf16.msra.mxu0 %v342
        %507 = vmatprep.subr.bf16.mxu0 0
        %508 = vmatpush1.bf16.msra.mxu0 %v339
        %509 = vmatprep.subr.bf16.mxu0 0
        %510 = vmatpush1.bf16.msra.mxu0 %v336
        %511 = vmatprep.subr.bf16.mxu0 0
        %512 = vmatpush2.bf16.msra.mxu0 0
        %513 = vmatprep.subr.bf16.mxu0 0
        %514 = vmatpush2.bf16.msra.mxu0 0
        %515 = vmatprep.subr.bf16.mxu0 0
        %516 = vmatpush2.bf16.msra.mxu0 0
        %517 = vmatprep.subr.bf16.mxu0 0
        %518 = vmatpush2.bf16.msra.mxu0 0
        %519 = vmatprep.subr.bf16.mxu0 0
        %520 = vmatpush2.bf16.msra.mxu0 0
        %521 = vmatprep.subr.bf16.mxu0 0
        %522 = vmatpush2.bf16.msra.mxu0 0
        %523 = vmatprep.subr.bf16.mxu0 0
        %524 = vmatpush2.bf16.msra.mxu0 0
        %525 = vmatprep.subr.bf16.mxu0 0
        %526 = vmatpush2.bf16.msra.mxu0 0
        %527 = vmatprep.mubr.bf16.mxu0 0
        %528 = vmatmul.mubr.bf16.gmra.mxu0 %v214
        %v529 = vpop.f32.mrf.mxu0
        %v530 = vadd.f32 0.0, %v529
        %v531 = vpop.f32.mrf.mxu0
        %v532 = vpop.f32.mrf.mxu0
        %v533 = vadd.f32 0.0, %v532
        %v534 = vpop.f32.mrf.mxu0
        %535 = vmatprep.mubr.bf16.mxu0 0
        %536 = vmatmul.mubr.bf16.gmra.mxu0 %v215
        %v537 = vpop.f32.mrf.mxu0
        %v538 = vadd.f32 0.0, %v537
        %v539 = vpop.f32.mrf.mxu0
        %v540 = vpop.f32.mrf.mxu0
        %v541 = vadd.f32 0.0, %v540
        %v542 = vpop.f32.mrf.mxu0
        %543 = vmatprep.mubr.bf16.mxu0 0
        %544 = vmatmul.mubr.bf16.gmra.mxu0 %v216
        %v545 = vpop.f32.mrf.mxu0
        %v546 = vadd.f32 0.0, %v545
        %v547 = vpop.f32.mrf.mxu0
        %v548 = vpop.f32.mrf.mxu0
        %v549 = vadd.f32 0.0, %v548
        %v550 = vpop.f32.mrf.mxu0
        %551 = vmatprep.mubr.bf16.mxu0 0
        %552 = vmatmul.mubr.bf16.gmra.mxu0 %v217
        %v553 = vpop.f32.mrf.mxu0
        %v554 = vadd.f32 0.0, %v553
        %v555 = vpop.f32.mrf.mxu0
        %v556 = vpop.f32.mrf.mxu0
        %v557 = vadd.f32 0.0, %v556
        %v558 = vpop.f32.mrf.mxu0
        %559 = vmatprep.mubr.bf16.mxu0 0
        %560 = vmatmul.mubr.bf16.gmra.mxu0 %v218
        %v561 = vpop.f32.mrf.mxu0
        %v562 = vadd.f32 0.0, %v561
        %v563 = vpop.f32.mrf.mxu0
        %v564 = vpop.f32.mrf.mxu0
        %v565 = vadd.f32 0.0, %v564
        %v566 = vpop.f32.mrf.mxu0
        %567 = vmatprep.mubr.bf16.mxu0 0
        %568 = vmatmul.mubr.bf16.gmra.mxu0 %v219
        %v569 = vpop.f32.mrf.mxu0
        %v570 = vadd.f32 0.0, %v569
        %v571 = vpop.f32.mrf.mxu0
        %v572 = vpop.f32.mrf.mxu0
        %v573 = vadd.f32 0.0, %v572
        %v574 = vpop.f32.mrf.mxu0
        %575 = vmatprep.mubr.bf16.mxu0 0
        %576 = vmatmul.mubr.bf16.gmra.mxu0 %v220
        %v577 = vpop.f32.mrf.mxu0
        %v578 = vadd.f32 0.0, %v577
        %v579 = vpop.f32.mrf.mxu0
        %v580 = vpop.f32.mrf.mxu0
        %v581 = vadd.f32 0.0, %v580
        %v582 = vpop.f32.mrf.mxu0
        %583 = vmatprep.mubr.bf16.mxu0 0
        %584 = vmatmul.mubr.bf16.gmra.mxu0 %v221
        %v585 = vpop.f32.mrf.mxu0
        %v586 = vadd.f32 0.0, %v585
        %v587 = vpop.f32.mrf.mxu0
        %v588 = vpop.f32.mrf.mxu0
        %v589 = vadd.f32 0.0, %v588
        %v590 = vpop.f32.mrf.mxu0
        %591 = vdwg.mxu0
        %v592 = vpack.c.bf16 %v421, %v417
        %v593 = vpack.c.bf16 %v423, %v419
        %v594 = vpack.c.bf16 %v533, %v530
        %v595 = vpack.c.bf16 %v431, %v427
        %v596 = vpack.c.bf16 %v433, %v429
        %v597 = vpack.c.bf16 %v541, %v538
        %v598 = vpack.c.bf16 %v441, %v437
        %v599 = vpack.c.bf16 %v443, %v439
        %v600 = vpack.c.bf16 %v549, %v546
        %v601 = vpack.c.bf16 %v451, %v447
        %v602 = vpack.c.bf16 %v453, %v449
        %v603 = vpack.c.bf16 %v557, %v554
        %v604 = vpack.c.bf16 %v461, %v457
        %v605 = vpack.c.bf16 %v463, %v459
        %v606 = vpack.c.bf16 %v565, %v562
        %v607 = vpack.c.bf16 %v471, %v467
        %v608 = vpack.c.bf16 %v473, %v469
        %v609 = vpack.c.bf16 %v573, %v570
        %v610 = vpack.c.bf16 %v481, %v477
        %v611 = vpack.c.bf16 %v483, %v479
        %v612 = vpack.c.bf16 %v581, %v578
        %v613 = vpack.c.bf16 %v491, %v487
        %v614 = vpack.c.bf16 %v493, %v489
        %v615 = vpack.c.bf16 %v589, %v586
        %v640 = vunpack.c.l.b16 %v592
        %v641 = vunpack.c.l.b16 %v593
        %v642 = vunpack.c.l.b16 %v594
        %v643 = vunpack.c.h.b16 %v592
        %v644 = vunpack.c.h.b16 %v593
        %v645 = vunpack.c.h.b16 %v594
        %v646 = vunpack.c.l.b16 %v595
        %v647 = vunpack.c.l.b16 %v596
        %v648 = vunpack.c.l.b16 %v597
        %v649 = vunpack.c.h.b16 %v595
        %v650 = vunpack.c.h.b16 %v596
        %v651 = vunpack.c.h.b16 %v597
        %v652 = vunpack.c.l.b16 %v598
        %v653 = vunpack.c.l.b16 %v599
        %v654 = vunpack.c.l.b16 %v600
        %v655 = vunpack.c.h.b16 %v598
        %v656 = vunpack.c.h.b16 %v599
        %v657 = vunpack.c.h.b16 %v600
        %v658 = vunpack.c.l.b16 %v601
        %v659 = vunpack.c.l.b16 %v602
        %v660 = vunpack.c.l.b16 %v603
        %v661 = vunpack.c.h.b16 %v601
        %v662 = vunpack.c.h.b16 %v602
        %v663 = vunpack.c.h.b16 %v603
        %v664 = vunpack.c.l.b16 %v604
        %v665 = vunpack.c.l.b16 %v605
        %v666 = vunpack.c.l.b16 %v606
        %v667 = vunpack.c.h.b16 %v604
        %v668 = vunpack.c.h.b16 %v605
        %v669 = vunpack.c.h.b16 %v606
        %v670 = vunpack.c.l.b16 %v607
        %v671 = vunpack.c.l.b16 %v608
        %v672 = vunpack.c.l.b16 %v609
        %v673 = vunpack.c.h.b16 %v607
        %v674 = vunpack.c.h.b16 %v608
        %v675 = vunpack.c.h.b16 %v609
        %v676 = vunpack.c.l.b16 %v610
        %v677 = vunpack.c.l.b16 %v611
        %v678 = vunpack.c.l.b16 %v612
        %v679 = vunpack.c.h.b16 %v610
        %v680 = vunpack.c.h.b16 %v611
        %v681 = vunpack.c.h.b16 %v612
        %v682 = vunpack.c.l.b16 %v613
        %v683 = vunpack.c.l.b16 %v614
        %v684 = vunpack.c.l.b16 %v615
        %v685 = vunpack.c.h.b16 %v613
        %v686 = vunpack.c.h.b16 %v614
        %v687 = vunpack.c.h.b16 %v615
        %v688 = vpack.c.b16 %v641, %v640
        %v689 = vpack.c.b16 %v642, %v642
        %v690 = vpack.c.b16 %v644, %v643
        %v691 = vpack.c.b16 %v645, %v645
        %v692 = vpack.c.b16 %v647, %v646
        %v693 = vpack.c.b16 %v648, %v648
        %v694 = vpack.c.b16 %v650, %v649
        %v695 = vpack.c.b16 %v651, %v651
        %v696 = vpack.c.b16 %v653, %v652
        %v697 = vpack.c.b16 %v654, %v654
        %v698 = vpack.c.b16 %v656, %v655
        %v699 = vpack.c.b16 %v657, %v657
        %v700 = vpack.c.b16 %v659, %v658
        %v701 = vpack.c.b16 %v660, %v660
        %v702 = vpack.c.b16 %v662, %v661
        %v703 = vpack.c.b16 %v663, %v663
        %v704 = vpack.c.b16 %v665, %v664
        %v705 = vpack.c.b16 %v666, %v666
        %v706 = vpack.c.b16 %v668, %v667
        %v707 = vpack.c.b16 %v669, %v669
        %v708 = vpack.c.b16 %v671, %v670
        %v709 = vpack.c.b16 %v672, %v672
        %v710 = vpack.c.b16 %v674, %v673
        %v711 = vpack.c.b16 %v675, %v675
        %v712 = vpack.c.b16 %v677, %v676
        %v713 = vpack.c.b16 %v678, %v678
        %v714 = vpack.c.b16 %v680, %v679
        %v715 = vpack.c.b16 %v681, %v681
        %v716 = vpack.c.b16 %v683, %v682
        %v717 = vpack.c.b16 %v684, %v684
        %v718 = vpack.c.b16 %v686, %v685
        %v719 = vpack.c.b16 %v687, %v687
        %752 = vst [vmem:[%s194] sm:$0xff] %v688
        %753 = vst [vmem:[%s194 + $0x8] sm:$0xf] %v689
        %754 = vst [vmem:[%s194 + $0xc] sm:$0xff] %v690
        %755 = vst [vmem:[%s194 + $0x14] sm:$0xf] %v691
        %756 = vst [vmem:[%s194 + $0x18] sm:$0xff] %v692
        %757 = vst [vmem:[%s194 + $0x20] sm:$0xf] %v693
        %758 = vst [vmem:[%s194 + $0x24] sm:$0xff] %v694
        %759 = vst [vmem:[%s194 + $0x2c] sm:$0xf] %v695
        %760 = vst [vmem:[%s194 + $0x30] sm:$0xff] %v696
        %761 = vst [vmem:[%s194 + $0x38] sm:$0xf] %v697
        %762 = vst [vmem:[%s194 + $0x3c] sm:$0xff] %v698
        %763 = vst [vmem:[%s194 + $0x44] sm:$0xf] %v699
        %764 = vst [vmem:[%s194 + $0x48] sm:$0xff] %v700
        %765 = vst [vmem:[%s194 + $0x50] sm:$0xf] %v701
        %766 = vst [vmem:[%s194 + $0x54] sm:$0xff] %v702
        %767 = vst [vmem:[%s194 + $0x5c] sm:$0xf] %v703
        %768 = vst [vmem:[%s194 + $0x60] sm:$0xff] %v704
        %769 = vst [vmem:[%s194 + $0x68] sm:$0xf] %v705
        %770 = vst [vmem:[%s194 + $0x6c] sm:$0xff] %v706
        %771 = vst [vmem:[%s194 + $0x74] sm:$0xf] %v707
        %772 = vst [vmem:[%s194 + $0x78] sm:$0xff] %v708
        %773 = vst [vmem:[%s194 + $0x80] sm:$0xf] %v709
        %774 = vst [vmem:[%s194 + $0x84] sm:$0xff] %v710
        %775 = vst [vmem:[%s194 + $0x8c] sm:$0xf] %v711
        %776 = vst [vmem:[%s194 + $0x90] sm:$0xff] %v712
        %777 = vst [vmem:[%s194 + $0x98] sm:$0xf] %v713
        %778 = vst [vmem:[%s194 + $0x9c] sm:$0xff] %v714
        %779 = vst [vmem:[%s194 + $0xa4] sm:$0xf] %v715
        %780 = vst [vmem:[%s194 + $0xa8] sm:$0xff] %v716
        %781 = vst [vmem:[%s194 + $0xb0] sm:$0xf] %v717
        %782 = vst [vmem:[%s194 + $0xb4] sm:$0xff] %v718
        %783 = vst [vmem:[%s194 + $0xbc] sm:$0xf] %v719
        %s784 = sand.u32 %s91, 1
        %s785 = scalar_lea.sflag [#allocation4], %s784
        %s786 = sand.u32 %s91, 1
        %s787 = smul.addr %s786, 192
        %s788 = scalar_lea.vmem [#allocation7], %s787
        // Predicated region
        $region37: #{tpu_custom_call.1} parent=27 // pred_check
          %p789 = pneg %p101
        $region38: #{tpu_custom_call.1} parent=27 // pred_check_branch
          %791 = sbr.rel (%p789) target = $region40
        $region39: #{tpu_custom_call.1} parent=27 // pred_region
          %s792 = smul.u32 16, %s25
          %s794 = ssub.s32 3072, 3072
          %795 = vsyncadd %s785, %s794
          %s796 = smul.addr %s792, 3
          %s797 = smul.addr %s24, 96
          %s798 = sadd.s32 %s796, %s797
          %s799 = smul.addr %s798, 64
          %s800 = scalar_lea.hbm %s2, %s799
          %s801 = sshll.u32 %s788, 4
          %s802 = int_to_ptr.vmem [resolvable:$true] %s801
          %807 = dma.vmem_to_hbm [thread:$0]  %s802, 3072, %s800, %s785, 192, 192, 12
        $region40: #{tpu_custom_call.1} parent=27 // pred_fallthru
          _
      $region28: #{tpu_custom_call.1} parent=5 // pred_fallthru
        _
      %p808 = scmp.le.s32.totalorder 2, %s15
      // Predicated region
      $region41: #{tpu_custom_call.1} parent=5 // pred_check
        %p809 = pneg %p808
      $region42: #{tpu_custom_call.1} parent=5 // pred_check_branch
        %811 = sbr.rel (%p809) target = $region44
      $region43: #{tpu_custom_call.1} parent=5 // pred_region
        %s812 = ssub.s32 %s15, 2
        // Predicated region
        $region45: #{tpu_custom_call.1} parent=43 // pred_check
          %p813 = pneg %p107
        $region46: #{tpu_custom_call.1} parent=43 // pred_check_branch
          %815 = sbr.rel (%p813) target = $region48
        $region47: #{tpu_custom_call.1} parent=43 // pred_region
          %s816 = sand.u32 %s92, 1
          %s817 = scalar_lea.sflag [#allocation4], %s816
          %s818 = sand.u32 %s92, 1
          %s819 = smul.addr %s818, 192
          %s820 = scalar_lea.vmem [#allocation7], %s819
          %821 = dma.done %s817, 3072
        $region48: #{tpu_custom_call.1} parent=43 // pred_fallthru
          _
      $region44: #{tpu_custom_call.1} parent=5 // pred_fallthru
        _
    $region6: #{tpu_custom_call.1} parent=1 // loop_footer
      %s19 = sadd.s32 1, %s15
    $region7: #{tpu_custom_call.1} parent=1 // loop_footer_branch
      %14 = sbr.rel target = $region3
    $region8: #{tpu_custom_call.1} parent=1 // loop_exit
      _
    %822 = vsyncpa [#allocation3], 1
    %s823 = scalar_lea.sflag [#allocation3], 1
    %824 = vsyncpa %s823, 1
    %825 = vsyncpa [#allocation6], 1
    %826 = vsyncpa [#allocation4], 1
    %s827 = scalar_lea.sflag [#allocation4], 1
    %828 = vsyncpa %s827, 1

</llo_original>
